<compile_context>
chip_gen: v5e
topology: v5e:2x2
jax: 0.10.0
libtpu: 0.0.40
codegen_flags: <defaults>
</compile_context>

<pallas_src>
import jax
import jax.numpy as jnp
import numpy as np
from jax.experimental import pallas as pl
from jax.experimental.pallas import tpu as pltpu


def _round_up(x, m):
    return ((x + m - 1) // m) * m


def _vmem_capacity_bytes():
    """Physical VMEM of the current chip; conservative default if unqueryable."""
    try:
        return int(pltpu.get_tpu_info().vmem_capacity_bytes)
    except Exception:
        return 64 * 1024 * 1024


def _pick_m_tile(M, C, resolutions, fm_itemsize):
    """Pick a lane-dense (128-multiple) M tile, generation-aware.

    Accounts for double-buffered featmap / uv / output blocks, the per-level
    [R^2, TM] weight slab plus its broadcast operands, and the accumulator.
    On 128-MiB chips (v5e/v6e) TM may reach 2048 with a 64 MiB limit; on 64-MiB
    chips (v7x) TM is capped at 1024 with a 32 MiB limit.  Never returns a
    non-128-multiple; the caller pads M up to a multiple of the tile.
    """
    vmem_cap = _vmem_capacity_bytes()
    if vmem_cap >= 96 * 1024 * 1024:           # v5e / v6e: 128 MiB physical VMEM
        candidates = (2048, 1024, 512, 256, 128)
        vmem_limit = 64 * 1024 * 1024
    else:                                      # v7x (64 MiB) or unknown: be conservative
        candidates = (1024, 512, 256, 128)
        vmem_limit = 32 * 1024 * 1024
    budget = vmem_limit - 2 * 1024 * 1024      # headroom for misc compiler scratch

    s_total = sum(R * R for R in resolutions)
    max_rr = max(R * R for R in resolutions)
    m128 = _round_up(M, 128)

    def estimate(tm):
        fm_blocks = 2 * C * s_total * fm_itemsize     # double-buffered featmap inputs
        io_blocks = 2 * (2 + C) * tm * 4              # uv + out blocks, double-buffered
        w_temps = 3 * max_rr * tm * 4                 # weight slab + broadcast operands
        acc = C * tm * 4
        return fm_blocks + io_blocks + w_temps + acc

    tm = 128
    for cand in candidates:                    # descending: first fit is the largest
        if cand > m128:
            continue
        if estimate(cand) <= budget:
            tm = cand
            break
    return tm, vmem_limit


def _make_kernel(resolutions, align_corners, dot_dtype):
    """Kernel body for one (group, M-tile) grid step.

    refs:
      uv_ref    : [2, TM]       f32  projected uv (row 0 = x, row 1 = y)
      fm_refs   : per level [C, R_l^2]  featmap of this group (f32 or bf16)
      out_ref   : [C, TM]       transposed output tile
    """
    num_levels = len(resolutions)

    def kernel(*refs):
        uv_ref = refs[0]
        fm_refs = refs[1:1 + num_levels]
        out_ref = refs[1 + num_levels]
        tm = out_ref.shape[-1]

        x = uv_ref[0:1, :]            # [1, TM]
        y = uv_ref[1:2, :]            # [1, TM]

        acc = None
        for fm_ref, R in zip(fm_refs, resolutions):
            # unnormalize ([-1, 1] -> pixel coords); padding_mode='border' -> clamp.
            if align_corners:
                ix = (x + 1.0) * (0.5 * (R - 1))
                iy = (y + 1.0) * (0.5 * (R - 1))
            else:
                ix = ((x + 1.0) * R - 1.0) * 0.5
                iy = ((y + 1.0) * R - 1.0) * 0.5
            ix = jnp.clip(ix, 0.0, R - 1.0)
            iy = jnp.clip(iy, 0.0, R - 1.0)

            ix0f = jnp.floor(ix)
            iy0f = jnp.floor(iy)
            wx1 = ix - ix0f
            wx0 = 1.0 - wx1
            wy1 = iy - iy0f
            wy0 = 1.0 - wy1
            x0 = ix0f.astype(jnp.int32)
            y0 = iy0f.astype(jnp.int32)
            x1 = jnp.minimum(x0 + 1, R - 1)
            y1 = jnp.minimum(y0 + 1, R - 1)

            if R % 8 == 0:
                # One-hot rows/cols built at full-sublane-tile [R, TM] (cheap 2-D compares),
                # combined by a broadcast outer product.  Coincident corners (border clamp)
                # correctly sum their weights.
                iota_r = jax.lax.broadcasted_iota(jnp.int32, (R, tm), 0)
                ohy = (jnp.where(iota_r == y0, wy0, 0.0)
                       + jnp.where(iota_r == y1, wy1, 0.0))           # [R, TM]
                ohx = (jnp.where(iota_r == x0, wx0, 0.0)
                       + jnp.where(iota_r == x1, wx1, 0.0))           # [R, TM]
                # R % 8 == 0 -> collapsing the leading dims after the outer product only
                # merges whole sublane tiles (layout-preserving reshape).
                w = (ohy[:, None, :] * ohx[None, :, :]).reshape(R * R, tm)
            else:
                # Fallback for tiny / non-multiple-of-8 resolutions: full-width one-hot.
                k = jax.lax.broadcasted_iota(jnp.int32, (R * R, tm), 0)
                ky = k // R
                kx = k - ky * R
                w = ((jnp.where(ky == y0, wy0, 0.0) + jnp.where(ky == y1, wy1, 0.0))
                     * (jnp.where(kx == x0, wx0, 0.0) + jnp.where(kx == x1, wx1, 0.0)))

            # Per-level MXU contraction; W_l dies right after its dot (no concat slab).
            d = jnp.dot(fm_ref[...], w.astype(dot_dtype),
                        preferred_element_type=jnp.float32)
            acc = d if acc is None else acc + d

        out_ref[...] = acc.astype(out_ref.dtype)

    return kernel


def make_node_feature_tile(featmaps, align_corners=True, use_bf16_matmul=False):
    """Precompute the per-level featmap buffers once (parameter plumbing, hoisted out of
    the per-forward path) and return a forward(points, node_uv_projection) closure.

    featmaps: list of [G, C, R_l, R_l] arrays (PyTorch NCHW parameter layout).
    """
    G, C = featmaps[0].shape[0], featmaps[0].shape[1]
    resolutions = tuple(int(fm.shape[-1]) for fm in featmaps)
    out_dtype = featmaps[0].dtype
    fm_dtype = jnp.bfloat16 if use_bf16_matmul else jnp.float32
    fm_itemsize = np.dtype(fm_dtype).itemsize
    # [G, C, R, R] -> [G, C, R*R]: trailing-dims reshape (free); astype is a no-op for
    # f32 parameters.  Done once here, not per forward.
    fms = tuple(fm.reshape(G, C, R * R).astype(fm_dtype)
                for fm, R in zip(featmaps, resolutions))
    s_total = sum(R * R for R in resolutions)

    kernel = _make_kernel(resolutions, align_corners, fm_dtype)

    def forward(points, node_uv_projection):
        B, G_, N, _ = points.shape
        assert G_ == G, "group dimension mismatch"

        # The tiny uv-projection einsum stays in pure JAX so the batch dim can be folded
        # into the kernel's matmul M axis even with per-batch projections, and the shared
        # (3-D) projection is never broadcast to [B, G, 2, 3].
        if node_uv_projection.ndim == 4:
            uv = jnp.einsum('bgnl,bgml->bgnm', points, node_uv_projection)
        elif node_uv_projection.ndim == 3:
            uv = jnp.einsum('bgnl,gml->bgnm', points, node_uv_projection)
        else:
            raise RuntimeError("Invalid shape of node_uv_projection!")
        uv = uv.astype(jnp.float32)

        M = B * N
        tm, vmem_limit = _pick_m_tile(M, C, resolutions, fm_itemsize)
        m_pad = _round_up(M, tm)

        # [B, G, N, 2] -> [G, 2, M]  (m = b*N + n): points go onto the 128-lane axis.
        uv_t = uv.transpose(1, 3, 0, 2).reshape(G, 2, M)
        if m_pad != M:
            # Pad to a lane-dense multiple of the tile (unmasked output stores); uv = 0 is
            # a valid in-range sample, and the padded columns are sliced off below.
            uv_t = jnp.pad(uv_t, ((0, 0), (0, 0), (0, m_pad - M)))

        grid = (G, m_pad // tm)   # M-tiles innermost: featmap blocks stay VMEM-resident per group.

        in_specs = [pl.BlockSpec((None, 2, tm), lambda g, m: (g, 0, m))]
        in_specs += [pl.BlockSpec((None, C, R * R), lambda g, m: (g, 0, 0))
                     for R in resolutions]

        flops = 2 * G * C * s_total * m_pad + 12 * G * s_total * m_pad
        bytes_accessed = (G * 2 * m_pad * 4
                          + sum(int(f.size) * f.dtype.itemsize for f in fms)
                          + G * C * m_pad * np.dtype(out_dtype).itemsize)

        out_t = pl.pallas_call(
            kernel,
            out_shape=jax.ShapeDtypeStruct((G, C, m_pad), out_dtype),
            grid=grid,
            in_specs=in_specs,
            out_specs=pl.BlockSpec((None, C, tm), lambda g, m: (g, 0, m)),
            compiler_params=pltpu.CompilerParams(
                # No accumulator across either grid axis -> both are parallel, so a
                # 2-TensorCore chip (v7x) can shard over M-tiles even when G is small.
                dimension_semantics=("parallel", "parallel"),
                vmem_limit_bytes=vmem_limit),
            cost_estimate=pl.CostEstimate(flops=flops, transcendentals=0,
                                          bytes_accessed=bytes_accessed),
        )(uv_t, *fms)

        # [G, C, M_pad] -> [B, G, N, C].  Kept outside the kernel: writing [TM, C] directly
        # would make the kernel's output last dim C (<128) -> masked, lane-sparse stores.
        # TODO(synk): skip this transpose when the consumer accepts a [G, C, B, N] layout.
        out_t = out_t[:, :, :M]
        return out_t.reshape(G, C, B, N).transpose(2, 0, 3, 1)

    return forward


def node_feature_tile_forward(points, node_uv_projection, featmaps,
                              align_corners=True, use_bf16_matmul=False):
    """One-shot convenience wrapper (prefer make_node_feature_tile to hoist the featmap
    prep out of the per-forward path).  Returns [B, G, N, C], matching
    NodeFeatureTile.forward."""
    fwd = make_node_feature_tile(featmaps, align_corners, use_bf16_matmul)
    return fwd(points, node_uv_projection)


def reference(points, node_uv_projection, featmaps, align_corners=True):
    """Pure-JAX reference of the PyTorch forward (einsum + grid_sample bilinear/border)."""
    if node_uv_projection.ndim == 3:
        uv = jnp.einsum('bgnl,gml->bgnm', points, node_uv_projection)
    else:
        uv = jnp.einsum('bgnl,bgml->bgnm', points, node_uv_projection)
    B, G, N, _ = uv.shape
    out = 0.0
    for fm in featmaps:
        _, C, H, W = fm.shape
        x = uv[..., 0]
        y = uv[..., 1]
        if align_corners:
            ix = (x + 1) * 0.5 * (W - 1)
            iy = (y + 1) * 0.5 * (H - 1)
        else:
            ix = ((x + 1) * W - 1) * 0.5
            iy = ((y + 1) * H - 1) * 0.5
        ix = jnp.clip(ix, 0, W - 1)
        iy = jnp.clip(iy, 0, H - 1)
        x0f = jnp.floor(ix)
        y0f = jnp.floor(iy)
        wx1 = ix - x0f
        wx0 = 1 - wx1
        wy1 = iy - y0f
        wy0 = 1 - wy1
        x0 = x0f.astype(jnp.int32)
        y0 = y0f.astype(jnp.int32)
        x1 = jnp.minimum(x0 + 1, W - 1)
        y1 = jnp.minimum(y0 + 1, H - 1)

        g_idx = jnp.arange(G)[None, :, None]

        def gather(yi, xi):
            return fm[g_idx, :, yi, xi]        # [B, G, N, C]

        v = (gather(y0, x0) * (wy0 * wx0)[..., None]
             + gather(y0, x1) * (wy0 * wx1)[..., None]
             + gather(y1, x0) * (wy1 * wx0)[..., None]
             + gather(y1, x1) * (wy1 * wx1)[..., None])
        out = out + v
    return out


if __name__ == "__main__":
    key = jax.random.PRNGKey(0)
    B, G, N, C = 2, 4, 16, 8
    num_levels, max_res = 3, 32
    align_corners = True

    k_pts, k_proj, k_fm = jax.random.split(key, 3)
    points = jax.random.normal(k_pts, (B, G, N, 3), jnp.float32)
    node_uv_projection = jax.random.normal(k_proj, (B, G, 2, 3), jnp.float32) * 0.3
    fm_keys = jax.random.split(k_fm, num_levels)
    # Deterministic stand-ins for the nn.Parameter featmaps (torch.randn(G, C, R, R)).
    featmaps = [
        jax.random.normal(fk, (G, C, max_res // 2 ** lvl, max_res // 2 ** lvl), jnp.float32)
        for lvl, fk in enumerate(fm_keys)
    ]

    # Featmap prep hoisted out of the per-forward path (done once per parameter update).
    fwd = make_node_feature_tile(featmaps, align_corners)

    # Per-batch (4-D) projection path.
    out = jax.block_until_ready(fwd(points, node_uv_projection))
    assert out.shape == (B, G, N, C)
    ref = reference(points, node_uv_projection, featmaps, align_corners)
    np.testing.assert_allclose(np.asarray(out), np.asarray(ref), rtol=1e-4, atol=1e-4)

    # Shared (3-D) projection path (no broadcast materialized).
    proj3 = node_uv_projection[0]
    out3 = jax.block_until_ready(fwd(points, proj3))
    ref3 = reference(points, proj3, featmaps, align_corners)
    np.testing.assert_allclose(np.asarray(out3), np.asarray(ref3), rtol=1e-4, atol=1e-4)

    # Optional bf16-matmul path (intentionally looser numerics, gated behind a flag).
    out_bf16 = jax.block_until_ready(
        node_feature_tile_forward(points, node_uv_projection, featmaps,
                                  align_corners, use_bf16_matmul=True))
    np.testing.assert_allclose(np.asarray(out_bf16), np.asarray(ref), rtol=0.1, atol=0.1)

    print("KERNEL_OK")
</pallas_src>

<mosaic_0001>
module attributes {stable_mosaic.version = 11 : i64} {
  func.func @kernel(%arg0: i32, %arg1: i32, %arg2: memref<1x2x128xf32, #tpu.memory_space<vmem>>, %arg3: memref<1x8x1024xf32, #tpu.memory_space<vmem>>, %arg4: memref<1x8x256xf32, #tpu.memory_space<vmem>>, %arg5: memref<1x8x64xf32, #tpu.memory_space<vmem>>, %arg6: memref<1x8x128xf32, #tpu.memory_space<vmem>>) attributes {dimension_semantics = [#tpu.dimension_semantics<parallel>, #tpu.dimension_semantics<parallel>], iteration_bounds = array<i64: 4, 1>, scalar_prefetch = 0 : i64, scratch_operands = 0 : i64, tpu.core_type = #tpu.core_type<tc>, window_params = [{transform_indices = @transform_0, window_bounds = array<i64: 1, 2, 128>}, {transform_indices = @transform_1, window_bounds = array<i64: 1, 8, 1024>}, {transform_indices = @transform_2, window_bounds = array<i64: 1, 8, 256>}, {transform_indices = @transform_3, window_bounds = array<i64: 1, 8, 64>}, {transform_indices = @transform_4, window_bounds = array<i64: 1, 8, 128>}]} {
    %c0 = arith.constant 0 : index
    %c0_0 = arith.constant 0 : index
    %c0_1 = arith.constant 0 : index
    %0 = vector.load %arg2[%c0, %c0_0, %c0_1] : memref<1x2x128xf32, #tpu.memory_space<vmem>>, vector<1x1x128xf32>
    %1 = vector.shape_cast %0 : vector<1x1x128xf32> to vector<1x128xf32>
    %c0_2 = arith.constant 0 : index
    %c1 = arith.constant 1 : index
    %c0_3 = arith.constant 0 : index
    %2 = vector.load %arg2[%c0_2, %c1, %c0_3] : memref<1x2x128xf32, #tpu.memory_space<vmem>>, vector<1x1x128xf32>
    %3 = vector.shape_cast %2 : vector<1x1x128xf32> to vector<1x128xf32>
    %cst = arith.constant 1.000000e+00 : f32
    %4 = vector.broadcast %cst : f32 to vector<1x128xf32>
    %5 = arith.addf %1, %4 : vector<1x128xf32>
    %cst_4 = arith.constant 1.550000e+01 : f32
    %6 = vector.broadcast %cst_4 : f32 to vector<1x128xf32>
    %7 = arith.mulf %5, %6 : vector<1x128xf32>
    %cst_5 = arith.constant 1.000000e+00 : f32
    %8 = vector.broadcast %cst_5 : f32 to vector<1x128xf32>
    %9 = arith.addf %3, %8 : vector<1x128xf32>
    %cst_6 = arith.constant 1.550000e+01 : f32
    %10 = vector.broadcast %cst_6 : f32 to vector<1x128xf32>
    %11 = arith.mulf %9, %10 : vector<1x128xf32>
    %cst_7 = arith.constant 0.000000e+00 : f32
    %cst_8 = arith.constant 3.100000e+01 : f32
    %12 = vector.broadcast %cst_7 : f32 to vector<1x128xf32>
    %13 = arith.maximumf %12, %7 : vector<1x128xf32>
    %14 = vector.broadcast %cst_8 : f32 to vector<1x128xf32>
    %15 = arith.minimumf %14, %13 : vector<1x128xf32>
    %cst_9 = arith.constant 0.000000e+00 : f32
    %cst_10 = arith.constant 3.100000e+01 : f32
    %16 = vector.broadcast %cst_9 : f32 to vector<1x128xf32>
    %17 = arith.maximumf %16, %11 : vector<1x128xf32>
    %18 = vector.broadcast %cst_10 : f32 to vector<1x128xf32>
    %19 = arith.minimumf %18, %17 : vector<1x128xf32>
    %20 = math.floor %15 : vector<1x128xf32>
    %21 = math.floor %19 : vector<1x128xf32>
    %22 = arith.subf %15, %20 : vector<1x128xf32>
    %cst_11 = arith.constant 1.000000e+00 : f32
    %23 = vector.broadcast %cst_11 : f32 to vector<1x128xf32>
    %24 = arith.subf %23, %22 : vector<1x128xf32>
    %25 = arith.subf %19, %21 : vector<1x128xf32>
    %cst_12 = arith.constant 1.000000e+00 : f32
    %26 = vector.broadcast %cst_12 : f32 to vector<1x128xf32>
    %27 = arith.subf %26, %25 : vector<1x128xf32>
    %28 = arith.fptosi %20 : vector<1x128xf32> to vector<1x128xi32>
    %29 = arith.fptosi %21 : vector<1x128xf32> to vector<1x128xi32>
    %c1_i32 = arith.constant 1 : i32
    %30 = vector.broadcast %c1_i32 : i32 to vector<1x128xi32>
    %31 = arith.addi %28, %30 : vector<1x128xi32>
    %c31_i32 = arith.constant 31 : i32
    %32 = vector.broadcast %c31_i32 : i32 to vector<1x128xi32>
    %33 = arith.minsi %31, %32 : vector<1x128xi32>
    %c1_i32_13 = arith.constant 1 : i32
    %34 = vector.broadcast %c1_i32_13 : i32 to vector<1x128xi32>
    %35 = arith.addi %29, %34 : vector<1x128xi32>
    %c31_i32_14 = arith.constant 31 : i32
    %36 = vector.broadcast %c31_i32_14 : i32 to vector<1x128xi32>
    %37 = arith.minsi %35, %36 : vector<1x128xi32>
    %38 = tpu.iota {dimensions = array<i32: 0>} : vector<32x128xi32>
    %39 = vector.broadcast %29 : vector<1x128xi32> to vector<32x128xi32>
    %40 = arith.cmpi eq, %38, %39 : vector<32x128xi32>
    %cst_15 = arith.constant 0.000000e+00 : f32
    %41 = vector.shape_cast %27 : vector<1x128xf32> to vector<1x128xf32>
    %42 = vector.broadcast %41 : vector<1x128xf32> to vector<32x128xf32>
    %43 = vector.broadcast %cst_15 : f32 to vector<32x128xf32>
    %44 = arith.select %40, %42, %43 : vector<32x128xi1>, vector<32x128xf32>
    %45 = vector.broadcast %37 : vector<1x128xi32> to vector<32x128xi32>
    %46 = arith.cmpi eq, %38, %45 : vector<32x128xi32>
    %cst_16 = arith.constant 0.000000e+00 : f32
    %47 = vector.shape_cast %25 : vector<1x128xf32> to vector<1x128xf32>
    %48 = vector.broadcast %47 : vector<1x128xf32> to vector<32x128xf32>
    %49 = vector.broadcast %cst_16 : f32 to vector<32x128xf32>
    %50 = arith.select %46, %48, %49 : vector<32x128xi1>, vector<32x128xf32>
    %51 = arith.addf %44, %50 : vector<32x128xf32>
    %52 = vector.broadcast %28 : vector<1x128xi32> to vector<32x128xi32>
    %53 = arith.cmpi eq, %38, %52 : vector<32x128xi32>
    %cst_17 = arith.constant 0.000000e+00 : f32
    %54 = vector.shape_cast %24 : vector<1x128xf32> to vector<1x128xf32>
    %55 = vector.broadcast %54 : vector<1x128xf32> to vector<32x128xf32>
    %56 = vector.broadcast %cst_17 : f32 to vector<32x128xf32>
    %57 = arith.select %53, %55, %56 : vector<32x128xi1>, vector<32x128xf32>
    %58 = vector.broadcast %33 : vector<1x128xi32> to vector<32x128xi32>
    %59 = arith.cmpi eq, %38, %58 : vector<32x128xi32>
    %cst_18 = arith.constant 0.000000e+00 : f32
    %60 = vector.shape_cast %22 : vector<1x128xf32> to vector<1x128xf32>
    %61 = vector.broadcast %60 : vector<1x128xf32> to vector<32x128xf32>
    %62 = vector.broadcast %cst_18 : f32 to vector<32x128xf32>
    %63 = arith.select %59, %61, %62 : vector<32x128xi1>, vector<32x128xf32>
    %64 = arith.addf %57, %63 : vector<32x128xf32>
    %65 = vector.shape_cast %51 : vector<32x128xf32> to vector<32x1x128xf32>
    %66 = vector.shape_cast %64 : vector<32x128xf32> to vector<1x32x128xf32>
    %67 = vector.broadcast %65 : vector<32x1x128xf32> to vector<32x32x128xf32>
    %68 = vector.broadcast %66 : vector<1x32x128xf32> to vector<32x32x128xf32>
    %69 = arith.mulf %67, %68 : vector<32x32x128xf32>
    %70 = vector.shape_cast %69 : vector<32x32x128xf32> to vector<1024x128xf32>
    %c0_19 = arith.constant 0 : index
    %c0_20 = arith.constant 0 : index
    %c0_21 = arith.constant 0 : index
    %71 = vector.load %arg3[%c0_19, %c0_20, %c0_21] : memref<1x8x1024xf32, #tpu.memory_space<vmem>>, vector<1x8x1024xf32>
    %72 = vector.shape_cast %71 : vector<1x8x1024xf32> to vector<8x1024xf32>
    %cst_22 = arith.constant dense<0.000000e+00> : vector<8x128xf32>
    %73 = tpu.matmul %72, %70, %cst_22 {dimension_numbers = #tpu.dot_dimension_numbers<[1], [0], [0], [1], [0, 0, 1, 1], [], []>} : vector<8x1024xf32>, vector<1024x128xf32>, vector<8x128xf32> -> vector<8x128xf32>
    %cst_23 = arith.constant 1.000000e+00 : f32
    %74 = vector.broadcast %cst_23 : f32 to vector<1x128xf32>
    %75 = arith.addf %1, %74 : vector<1x128xf32>
    %cst_24 = arith.constant 7.500000e+00 : f32
    %76 = vector.broadcast %cst_24 : f32 to vector<1x128xf32>
    %77 = arith.mulf %75, %76 : vector<1x128xf32>
    %cst_25 = arith.constant 1.000000e+00 : f32
    %78 = vector.broadcast %cst_25 : f32 to vector<1x128xf32>
    %79 = arith.addf %3, %78 : vector<1x128xf32>
    %cst_26 = arith.constant 7.500000e+00 : f32
    %80 = vector.broadcast %cst_26 : f32 to vector<1x128xf32>
    %81 = arith.mulf %79, %80 : vector<1x128xf32>
    %cst_27 = arith.constant 0.000000e+00 : f32
    %cst_28 = arith.constant 1.500000e+01 : f32
    %82 = vector.broadcast %cst_27 : f32 to vector<1x128xf32>
    %83 = arith.maximumf %82, %77 : vector<1x128xf32>
    %84 = vector.broadcast %cst_28 : f32 to vector<1x128xf32>
    %85 = arith.minimumf %84, %83 : vector<1x128xf32>
    %cst_29 = arith.constant 0.000000e+00 : f32
    %cst_30 = arith.constant 1.500000e+01 : f32
    %86 = vector.broadcast %cst_29 : f32 to vector<1x128xf32>
    %87 = arith.maximumf %86, %81 : vector<1x128xf32>
    %88 = vector.broadcast %cst_30 : f32 to vector<1x128xf32>
    %89 = arith.minimumf %88, %87 : vector<1x128xf32>
    %90 = math.floor %85 : vector<1x128xf32>
    %91 = math.floor %89 : vector<1x128xf32>
    %92 = arith.subf %85, %90 : vector<1x128xf32>
    %cst_31 = arith.constant 1.000000e+00 : f32
    %93 = vector.broadcast %cst_31 : f32 to vector<1x128xf32>
    %94 = arith.subf %93, %92 : vector<1x128xf32>
    %95 = arith.subf %89, %91 : vector<1x128xf32>
    %cst_32 = arith.constant 1.000000e+00 : f32
    %96 = vector.broadcast %cst_32 : f32 to vector<1x128xf32>
    %97 = arith.subf %96, %95 : vector<1x128xf32>
    %98 = arith.fptosi %90 : vector<1x128xf32> to vector<1x128xi32>
    %99 = arith.fptosi %91 : vector<1x128xf32> to vector<1x128xi32>
    %c1_i32_33 = arith.constant 1 : i32
    %100 = vector.broadcast %c1_i32_33 : i32 to vector<1x128xi32>
    %101 = arith.addi %98, %100 : vector<1x128xi32>
    %c15_i32 = arith.constant 15 : i32
    %102 = vector.broadcast %c15_i32 : i32 to vector<1x128xi32>
    %103 = arith.minsi %101, %102 : vector<1x128xi32>
    %c1_i32_34 = arith.constant 1 : i32
    %104 = vector.broadcast %c1_i32_34 : i32 to vector<1x128xi32>
    %105 = arith.addi %99, %104 : vector<1x128xi32>
    %c15_i32_35 = arith.constant 15 : i32
    %106 = vector.broadcast %c15_i32_35 : i32 to vector<1x128xi32>
    %107 = arith.minsi %105, %106 : vector<1x128xi32>
    %108 = tpu.iota {dimensions = array<i32: 0>} : vector<16x128xi32>
    %109 = vector.broadcast %99 : vector<1x128xi32> to vector<16x128xi32>
    %110 = arith.cmpi eq, %108, %109 : vector<16x128xi32>
    %cst_36 = arith.constant 0.000000e+00 : f32
    %111 = vector.shape_cast %97 : vector<1x128xf32> to vector<1x128xf32>
    %112 = vector.broadcast %111 : vector<1x128xf32> to vector<16x128xf32>
    %113 = vector.broadcast %cst_36 : f32 to vector<16x128xf32>
    %114 = arith.select %110, %112, %113 : vector<16x128xi1>, vector<16x128xf32>
    %115 = vector.broadcast %107 : vector<1x128xi32> to vector<16x128xi32>
    %116 = arith.cmpi eq, %108, %115 : vector<16x128xi32>
    %cst_37 = arith.constant 0.000000e+00 : f32
    %117 = vector.shape_cast %95 : vector<1x128xf32> to vector<1x128xf32>
    %118 = vector.broadcast %117 : vector<1x128xf32> to vector<16x128xf32>
    %119 = vector.broadcast %cst_37 : f32 to vector<16x128xf32>
    %120 = arith.select %116, %118, %119 : vector<16x128xi1>, vector<16x128xf32>
    %121 = arith.addf %114, %120 : vector<16x128xf32>
    %122 = vector.broadcast %98 : vector<1x128xi32> to vector<16x128xi32>
    %123 = arith.cmpi eq, %108, %122 : vector<16x128xi32>
    %cst_38 = arith.constant 0.000000e+00 : f32
    %124 = vector.shape_cast %94 : vector<1x128xf32> to vector<1x128xf32>
    %125 = vector.broadcast %124 : vector<1x128xf32> to vector<16x128xf32>
    %126 = vector.broadcast %cst_38 : f32 to vector<16x128xf32>
    %127 = arith.select %123, %125, %126 : vector<16x128xi1>, vector<16x128xf32>
    %128 = vector.broadcast %103 : vector<1x128xi32> to vector<16x128xi32>
    %129 = arith.cmpi eq, %108, %128 : vector<16x128xi32>
    %cst_39 = arith.constant 0.000000e+00 : f32
    %130 = vector.shape_cast %92 : vector<1x128xf32> to vector<1x128xf32>
    %131 = vector.broadcast %130 : vector<1x128xf32> to vector<16x128xf32>
    %132 = vector.broadcast %cst_39 : f32 to vector<16x128xf32>
    %133 = arith.select %129, %131, %132 : vector<16x128xi1>, vector<16x128xf32>
    %134 = arith.addf %127, %133 : vector<16x128xf32>
    %135 = vector.shape_cast %121 : vector<16x128xf32> to vector<16x1x128xf32>
    %136 = vector.shape_cast %134 : vector<16x128xf32> to vector<1x16x128xf32>
    %137 = vector.broadcast %135 : vector<16x1x128xf32> to vector<16x16x128xf32>
    %138 = vector.broadcast %136 : vector<1x16x128xf32> to vector<16x16x128xf32>
    %139 = arith.mulf %137, %138 : vector<16x16x128xf32>
    %140 = vector.shape_cast %139 : vector<16x16x128xf32> to vector<256x128xf32>
    %c0_40 = arith.constant 0 : index
    %c0_41 = arith.constant 0 : index
    %c0_42 = arith.constant 0 : index
    %141 = vector.load %arg4[%c0_40, %c0_41, %c0_42] : memref<1x8x256xf32, #tpu.memory_space<vmem>>, vector<1x8x256xf32>
    %142 = vector.shape_cast %141 : vector<1x8x256xf32> to vector<8x256xf32>
    %cst_43 = arith.constant dense<0.000000e+00> : vector<8x128xf32>
    %143 = tpu.matmul %142, %140, %cst_43 {dimension_numbers = #tpu.dot_dimension_numbers<[1], [0], [0], [1], [0, 0, 1, 1], [], []>} : vector<8x256xf32>, vector<256x128xf32>, vector<8x128xf32> -> vector<8x128xf32>
    %144 = arith.addf %73, %143 : vector<8x128xf32>
    %cst_44 = arith.constant 1.000000e+00 : f32
    %145 = vector.broadcast %cst_44 : f32 to vector<1x128xf32>
    %146 = arith.addf %1, %145 : vector<1x128xf32>
    %cst_45 = arith.constant 3.500000e+00 : f32
    %147 = vector.broadcast %cst_45 : f32 to vector<1x128xf32>
    %148 = arith.mulf %146, %147 : vector<1x128xf32>
    %cst_46 = arith.constant 1.000000e+00 : f32
    %149 = vector.broadcast %cst_46 : f32 to vector<1x128xf32>
    %150 = arith.addf %3, %149 : vector<1x128xf32>
    %cst_47 = arith.constant 3.500000e+00 : f32
    %151 = vector.broadcast %cst_47 : f32 to vector<1x128xf32>
    %152 = arith.mulf %150, %151 : vector<1x128xf32>
    %cst_48 = arith.constant 0.000000e+00 : f32
    %cst_49 = arith.constant 7.000000e+00 : f32
    %153 = vector.broadcast %cst_48 : f32 to vector<1x128xf32>
    %154 = arith.maximumf %153, %148 : vector<1x128xf32>
    %155 = vector.broadcast %cst_49 : f32 to vector<1x128xf32>
    %156 = arith.minimumf %155, %154 : vector<1x128xf32>
    %cst_50 = arith.constant 0.000000e+00 : f32
    %cst_51 = arith.constant 7.000000e+00 : f32
    %157 = vector.broadcast %cst_50 : f32 to vector<1x128xf32>
    %158 = arith.maximumf %157, %152 : vector<1x128xf32>
    %159 = vector.broadcast %cst_51 : f32 to vector<1x128xf32>
    %160 = arith.minimumf %159, %158 : vector<1x128xf32>
    %161 = math.floor %156 : vector<1x128xf32>
    %162 = math.floor %160 : vector<1x128xf32>
    %163 = arith.subf %156, %161 : vector<1x128xf32>
    %cst_52 = arith.constant 1.000000e+00 : f32
    %164 = vector.broadcast %cst_52 : f32 to vector<1x128xf32>
    %165 = arith.subf %164, %163 : vector<1x128xf32>
    %166 = arith.subf %160, %162 : vector<1x128xf32>
    %cst_53 = arith.constant 1.000000e+00 : f32
    %167 = vector.broadcast %cst_53 : f32 to vector<1x128xf32>
    %168 = arith.subf %167, %166 : vector<1x128xf32>
    %169 = arith.fptosi %161 : vector<1x128xf32> to vector<1x128xi32>
    %170 = arith.fptosi %162 : vector<1x128xf32> to vector<1x128xi32>
    %c1_i32_54 = arith.constant 1 : i32
    %171 = vector.broadcast %c1_i32_54 : i32 to vector<1x128xi32>
    %172 = arith.addi %169, %171 : vector<1x128xi32>
    %c7_i32 = arith.constant 7 : i32
    %173 = vector.broadcast %c7_i32 : i32 to vector<1x128xi32>
    %174 = arith.minsi %172, %173 : vector<1x128xi32>
    %c1_i32_55 = arith.constant 1 : i32
    %175 = vector.broadcast %c1_i32_55 : i32 to vector<1x128xi32>
    %176 = arith.addi %170, %175 : vector<1x128xi32>
    %c7_i32_56 = arith.constant 7 : i32
    %177 = vector.broadcast %c7_i32_56 : i32 to vector<1x128xi32>
    %178 = arith.minsi %176, %177 : vector<1x128xi32>
    %179 = tpu.iota {dimensions = array<i32: 0>} : vector<8x128xi32>
    %180 = vector.broadcast %170 : vector<1x128xi32> to vector<8x128xi32>
    %181 = arith.cmpi eq, %179, %180 : vector<8x128xi32>
    %cst_57 = arith.constant 0.000000e+00 : f32
    %182 = vector.shape_cast %168 : vector<1x128xf32> to vector<1x128xf32>
    %183 = vector.broadcast %182 : vector<1x128xf32> to vector<8x128xf32>
    %184 = vector.broadcast %cst_57 : f32 to vector<8x128xf32>
    %185 = arith.select %181, %183, %184 : vector<8x128xi1>, vector<8x128xf32>
    %186 = vector.broadcast %178 : vector<1x128xi32> to vector<8x128xi32>
    %187 = arith.cmpi eq, %179, %186 : vector<8x128xi32>
    %cst_58 = arith.constant 0.000000e+00 : f32
    %188 = vector.shape_cast %166 : vector<1x128xf32> to vector<1x128xf32>
    %189 = vector.broadcast %188 : vector<1x128xf32> to vector<8x128xf32>
    %190 = vector.broadcast %cst_58 : f32 to vector<8x128xf32>
    %191 = arith.select %187, %189, %190 : vector<8x128xi1>, vector<8x128xf32>
    %192 = arith.addf %185, %191 : vector<8x128xf32>
    %193 = vector.broadcast %169 : vector<1x128xi32> to vector<8x128xi32>
    %194 = arith.cmpi eq, %179, %193 : vector<8x128xi32>
    %cst_59 = arith.constant 0.000000e+00 : f32
    %195 = vector.shape_cast %165 : vector<1x128xf32> to vector<1x128xf32>
    %196 = vector.broadcast %195 : vector<1x128xf32> to vector<8x128xf32>
    %197 = vector.broadcast %cst_59 : f32 to vector<8x128xf32>
    %198 = arith.select %194, %196, %197 : vector<8x128xi1>, vector<8x128xf32>
    %199 = vector.broadcast %174 : vector<1x128xi32> to vector<8x128xi32>
    %200 = arith.cmpi eq, %179, %199 : vector<8x128xi32>
    %cst_60 = arith.constant 0.000000e+00 : f32
    %201 = vector.shape_cast %163 : vector<1x128xf32> to vector<1x128xf32>
    %202 = vector.broadcast %201 : vector<1x128xf32> to vector<8x128xf32>
    %203 = vector.broadcast %cst_60 : f32 to vector<8x128xf32>
    %204 = arith.select %200, %202, %203 : vector<8x128xi1>, vector<8x128xf32>
    %205 = arith.addf %198, %204 : vector<8x128xf32>
    %206 = vector.shape_cast %192 : vector<8x128xf32> to vector<8x1x128xf32>
    %207 = vector.shape_cast %205 : vector<8x128xf32> to vector<1x8x128xf32>
    %208 = vector.broadcast %206 : vector<8x1x128xf32> to vector<8x8x128xf32>
    %209 = vector.broadcast %207 : vector<1x8x128xf32> to vector<8x8x128xf32>
    %210 = arith.mulf %208, %209 : vector<8x8x128xf32>
    %211 = vector.shape_cast %210 : vector<8x8x128xf32> to vector<64x128xf32>
    %c0_61 = arith.constant 0 : index
    %c0_62 = arith.constant 0 : index
    %c0_63 = arith.constant 0 : index
    %212 = vector.load %arg5[%c0_61, %c0_62, %c0_63] : memref<1x8x64xf32, #tpu.memory_space<vmem>>, vector<1x8x64xf32>
    %213 = vector.shape_cast %212 : vector<1x8x64xf32> to vector<8x64xf32>
    %cst_64 = arith.constant dense<0.000000e+00> : vector<8x128xf32>
    %214 = tpu.matmul %213, %211, %cst_64 {dimension_numbers = #tpu.dot_dimension_numbers<[1], [0], [0], [1], [0, 0, 1, 1], [], []>} : vector<8x64xf32>, vector<64x128xf32>, vector<8x128xf32> -> vector<8x128xf32>
    %215 = arith.addf %144, %214 : vector<8x128xf32>
    %c0_65 = arith.constant 0 : index
    %c0_66 = arith.constant 0 : index
    %c0_67 = arith.constant 0 : index
    %216 = vector.load %arg6[%c0_65, %c0_66, %c0_67] : memref<1x8x128xf32, #tpu.memory_space<vmem>>, vector<1x8x128xf32>
    %217 = vector.shape_cast %216 : vector<1x8x128xf32> to vector<8x128xf32>
    %218 = vector.shape_cast %215 : vector<8x128xf32> to vector<1x8x128xf32>
    tpu.vector_store %arg6[%c0_65, %c0_66, %c0_67], %218 {strides = array<i32>} : memref<1x8x128xf32, #tpu.memory_space<vmem>>, vector<1x8x128xf32>,
    return
  }
  func.func @transform_0(%arg0: i32, %arg1: i32) -> (i32, i32, i32) {
    %c0_i32 = arith.constant 0 : i32
    %c0_i32_0 = arith.constant 0 : i32
    return %arg0, %c0_i32, %arg1 : i32, i32, i32
  }
  func.func @transform_1(%arg0: i32, %arg1: i32) -> (i32, i32, i32) {
    %c0_i32 = arith.constant 0 : i32
    %c0_i32_0 = arith.constant 0 : i32
    %c0_i32_1 = arith.constant 0 : i32
    return %arg0, %c0_i32, %c0_i32_0 : i32, i32, i32
  }
  func.func @transform_2(%arg0: i32, %arg1: i32) -> (i32, i32, i32) {
    %c0_i32 = arith.constant 0 : i32
    %c0_i32_0 = arith.constant 0 : i32
    %c0_i32_1 = arith.constant 0 : i32
    return %arg0, %c0_i32, %c0_i32_0 : i32, i32, i32
  }
  func.func @transform_3(%arg0: i32, %arg1: i32) -> (i32, i32, i32) {
    %c0_i32 = arith.constant 0 : i32
    %c0_i32_0 = arith.constant 0 : i32
    %c0_i32_1 = arith.constant 0 : i32
    return %arg0, %c0_i32, %c0_i32_0 : i32, i32, i32
  }
  func.func @transform_4(%arg0: i32, %arg1: i32) -> (i32, i32, i32) {
    %c0_i32 = arith.constant 0 : i32
    %c0_i32_0 = arith.constant 0 : i32
    return %arg0, %c0_i32, %arg1 : i32, i32, i32
  }
}

</mosaic_0001>

<llo_original>
// kernel: tpu_custom_call.1
$region0: #{tpu_custom_call.1}
  #allocation0 [shape = 'u32[]', space=smem, size = 0x4, offset = 0x4, fixed_abs, tag = 'smem constant byte address 0x4 - core index']
  #allocation1 [shape = 'u32[72,128]{1,0:T(1,128)}', space=vmem, size = 0x9000, scoped, tag = 'internal scratch']
  %s0 = inlined_call_operand.hbm [shape: f32[4,2,128], index: 0, kind: input, shape index: {}]
  %s1 = inlined_call_operand.hbm [shape: f32[4,8,1024], index: 1, kind: input, shape index: {}]
  %s2 = inlined_call_operand.hbm [shape: f32[4,8,256], index: 2, kind: input, shape index: {}]
  %s3 = inlined_call_operand.hbm [shape: f32[4,8,64], index: 3, kind: input, shape index: {}]
  %s4 = inlined_call_operand.hbm [shape: f32[4,8,128], index: 4, kind: output, shape index: {}]
  %s5 = sld [smem:[#allocation0]]
  $region65: #{tpu_custom_call.1} parent=0
    _
  %s7 = ssub.s32 1, %s5
  %s8 = scalar_select 0, %s7, %s5
  $region1: #{tpu_custom_call.1} parent=0
    #allocation2 [shape = 'u8[2048]{0}', space=vmem, size = 0x800, scoped, tag = 'input window, operand 0']
    #allocation3 [shape = 's32[2]{0}', space=sflag, size = 0x8, scoped, tag = 'scoped memory for tpu_custom_call.1']
    #allocation4 [shape = 's32[2]{0}', space=sflag, size = 0x8, scoped, tag = 'scoped memory for tpu_custom_call.1']
    #allocation5 [shape = 'u8[65536]{0}', space=vmem, size = 0x10000, scoped, tag = 'input window, operand 1']
    #allocation6 [shape = 's32[2]{0}', space=sflag, size = 0x8, scoped, tag = 'scoped memory for tpu_custom_call.1']
    #allocation7 [shape = 'u8[16384]{0}', space=vmem, size = 0x4000, scoped, tag = 'input window, operand 2']
    #allocation8 [shape = 'u8[8192]{0}', space=vmem, size = 0x2000, scoped, tag = 'input window, operand 3']
    #allocation9 [shape = 's32[2]{0}', space=sflag, size = 0x8, scoped, tag = 'scoped memory for tpu_custom_call.1']
    #allocation10 [shape = 'u8[8192]{0}', space=vmem, size = 0x2000, scoped, tag = 'output window, operand 0']
    %9 = vsyncpa [#allocation3], 0
    %s10 = scalar_lea.sflag [#allocation3], 1
    %11 = vsyncpa %s10, 0
    %12 = vsyncpa [#allocation6], 0
    %s13 = scalar_lea.sflag [#allocation6], 1
    %14 = vsyncpa %s13, 0
    %15 = vsyncpa [#allocation9], 0
    %s16 = scalar_lea.sflag [#allocation9], 1
    %17 = vsyncpa %s16, 0
    %18 = vsyncpa [#allocation4], 0
    %s19 = scalar_lea.sflag [#allocation4], 1
    %20 = vsyncpa %s19, 0
    loop: start=0, step=1, limit=6
    $region2: #{tpu_custom_call.1} parent=1 // loop_pre_header
      _
    $region3: #{tpu_custom_call.1} parent=1 // loop_header
      %s22 = sphi 0, %s26
      %p23 = scmp.ge.s32.totalorder %s22, 6
      %s29 = sphi 0, %s41
      %s30 = sphi 0, %s37
      %s31 = sphi 0, %s29
      %s32 = sphi 0, %s30
      %s33 = sphi 0, %s31
      %s34 = sphi 0, %s32
      %s46 = sphi 0, %s48
      %s49 = sphi 0, %s46
      %s50 = sphi 0, %s49
      %s66 = sphi 0, %s50
      %s72 = sphi 0, %s74
      %s75 = sphi 0, %s72
      %s76 = sphi 0, %s75
      %s92 = sphi 0, %s76
      %s98 = sphi 0, %s100
      %s101 = sphi 0, %s98
      %s102 = sphi 0, %s101
      %s118 = sphi 0, %s102
      %s124 = sphi 0, %s126
      %s127 = sphi 0, %s124
      %s128 = sphi 0, %s127
      %s144 = sphi 0, %s128
      %s152 = sphi 0, %s154
      %s155 = sphi 0, %s152
      %s156 = sphi 0, %s155
      %s172 = sphi 0, %s156
    $region4: #{tpu_custom_call.1} parent=1 // loop_header_branch
      %25 = sbr.rel (%p23) target = $region8
    $region5: #{tpu_custom_call.1} parent=1 // loop_body
      %s27 = ssub.s32 %s22, 1
      %s28 = ssub.s32 %s22, 2
      %s35 = sadd.s32 1, %s30
      %p36 = scmp.ge.s32.totalorder %s35, 1
      %s37 = scalar_select %p36, 0, %s35
      %s38 = sadd.s32 1, %s29
      %s39 = scalar_select %p36, %s38, %s29
      %p40 = scmp.ge.s32.totalorder %s39, 4
      %s41 = scalar_select %p40, 0, %s39
      %s42 = ssub.s32 %s29, %s41
      %s43 = ssub.s32 %s30, %s37
      %s44 = sor.u32 %s42, %s43
      %p45 = scmp.eq.s32.totalorder %s44, 0
      %s47 = sadd.s32 %s46, 1
      %s48 = scalar_select %p45, %s46, %s47
      %p51 = pneg %p45
      %p52 = scmp.eq.s32.totalorder %s22, 3
      %p53 = por %p51, %p52
      %p54 = scmp.ne.s32.totalorder %s46, %s49
      %p55 = scmp.eq.s32.totalorder %s22, 0
      %p56 = por %p54, %p55
      %p57 = scmp.ne.s32.totalorder %s46, %s49
      %p58 = scmp.eq.s32.totalorder %s27, 3
      %p59 = por %p57, %p58
      %p60 = scmp.ne.s32.totalorder %s49, %s50
      %p61 = scmp.eq.s32.totalorder %s27, 0
      %p62 = por %p60, %p61
      %p63 = scmp.ne.s32.totalorder %s49, %s50
      %p64 = scmp.eq.s32.totalorder %s28, 3
      %p65 = por %p63, %p64
      %p67 = scmp.ne.s32.totalorder %s50, %s66
      %p68 = scmp.eq.s32.totalorder %s28, 0
      %p69 = por %p67, %p68
      %s70 = ssub.s32 %s29, %s41
      %p71 = scmp.eq.s32.totalorder %s70, 0
      %s73 = sadd.s32 %s72, 1
      %s74 = scalar_select %p71, %s72, %s73
      %p77 = pneg %p71
      %p78 = scmp.eq.s32.totalorder %s22, 3
      %p79 = por %p77, %p78
      %p80 = scmp.ne.s32.totalorder %s72, %s75
      %p81 = scmp.eq.s32.totalorder %s22, 0
      %p82 = por %p80, %p81
      %p83 = scmp.ne.s32.totalorder %s72, %s75
      %p84 = scmp.eq.s32.totalorder %s27, 3
      %p85 = por %p83, %p84
      %p86 = scmp.ne.s32.totalorder %s75, %s76
      %p87 = scmp.eq.s32.totalorder %s27, 0
      %p88 = por %p86, %p87
      %p89 = scmp.ne.s32.totalorder %s75, %s76
      %p90 = scmp.eq.s32.totalorder %s28, 3
      %p91 = por %p89, %p90
      %p93 = scmp.ne.s32.totalorder %s76, %s92
      %p94 = scmp.eq.s32.totalorder %s28, 0
      %p95 = por %p93, %p94
      %s96 = ssub.s32 %s29, %s41
      %p97 = scmp.eq.s32.totalorder %s96, 0
      %s99 = sadd.s32 %s98, 1
      %s100 = scalar_select %p97, %s98, %s99
      %p103 = pneg %p97
      %p104 = scmp.eq.s32.totalorder %s22, 3
      %p105 = por %p103, %p104
      %p106 = scmp.ne.s32.totalorder %s98, %s101
      %p107 = scmp.eq.s32.totalorder %s22, 0
      %p108 = por %p106, %p107
      %p109 = scmp.ne.s32.totalorder %s98, %s101
      %p110 = scmp.eq.s32.totalorder %s27, 3
      %p111 = por %p109, %p110
      %p112 = scmp.ne.s32.totalorder %s101, %s102
      %p113 = scmp.eq.s32.totalorder %s27, 0
      %p114 = por %p112, %p113
      %p115 = scmp.ne.s32.totalorder %s101, %s102
      %p116 = scmp.eq.s32.totalorder %s28, 3
      %p117 = por %p115, %p116
      %p119 = scmp.ne.s32.totalorder %s102, %s118
      %p120 = scmp.eq.s32.totalorder %s28, 0
      %p121 = por %p119, %p120
      %s122 = ssub.s32 %s29, %s41
      %p123 = scmp.eq.s32.totalorder %s122, 0
      %s125 = sadd.s32 %s124, 1
      %s126 = scalar_select %p123, %s124, %s125
      %p129 = pneg %p123
      %p130 = scmp.eq.s32.totalorder %s22, 3
      %p131 = por %p129, %p130
      %p132 = scmp.ne.s32.totalorder %s124, %s127
      %p133 = scmp.eq.s32.totalorder %s22, 0
      %p134 = por %p132, %p133
      %p135 = scmp.ne.s32.totalorder %s124, %s127
      %p136 = scmp.eq.s32.totalorder %s27, 3
      %p137 = por %p135, %p136
      %p138 = scmp.ne.s32.totalorder %s127, %s128
      %p139 = scmp.eq.s32.totalorder %s27, 0
      %p140 = por %p138, %p139
      %p141 = scmp.ne.s32.totalorder %s127, %s128
      %p142 = scmp.eq.s32.totalorder %s28, 3
      %p143 = por %p141, %p142
      %p145 = scmp.ne.s32.totalorder %s128, %s144
      %p146 = scmp.eq.s32.totalorder %s28, 0
      %p147 = por %p145, %p146
      %s148 = ssub.s32 %s29, %s41
      %s149 = ssub.s32 %s30, %s37
      %s150 = sor.u32 %s148, %s149
      %p151 = scmp.eq.s32.totalorder %s150, 0
      %s153 = sadd.s32 %s152, 1
      %s154 = scalar_select %p151, %s152, %s153
      %p157 = pneg %p151
      %p158 = scmp.eq.s32.totalorder %s22, 3
      %p159 = por %p157, %p158
      %p160 = scmp.ne.s32.totalorder %s152, %s155
      %p161 = scmp.eq.s32.totalorder %s22, 0
      %p162 = por %p160, %p161
      %p163 = scmp.ne.s32.totalorder %s152, %s155
      %p164 = scmp.eq.s32.totalorder %s27, 3
      %p165 = por %p163, %p164
      %p166 = scmp.ne.s32.totalorder %s155, %s156
      %p167 = scmp.eq.s32.totalorder %s27, 0
      %p168 = por %p166, %p167
      %p169 = scmp.ne.s32.totalorder %s155, %s156
      %p170 = scmp.eq.s32.totalorder %s28, 3
      %p171 = por %p169, %p170
      %p173 = scmp.ne.s32.totalorder %s156, %s172
      %p174 = scmp.eq.s32.totalorder %s28, 0
      %p175 = por %p173, %p174
      %p176 = scmp.le.s32.totalorder 1, %s22
      %p177 = scmp.lt.s32.totalorder %s22, 5
      %p178 = pnand %p176, %p177
      %p179 = pneg %p178
      // Predicated region
      $region9: #{tpu_custom_call.1} parent=5 // pred_check
        _
      $region10: #{tpu_custom_call.1} parent=5 // pred_check_branch
        %181 = sbr.rel (%p178) target = $region12
      $region11: #{tpu_custom_call.1} parent=5 // pred_region
        %s182 = ssub.s32 %s22, 1
      $region12: #{tpu_custom_call.1} parent=5 // pred_fallthru
        _
      %p183 = scmp.lt.s32.totalorder %s22, 4
      // Predicated region
      $region13: #{tpu_custom_call.1} parent=5 // pred_check
        %p184 = pneg %p183
      $region14: #{tpu_custom_call.1} parent=5 // pred_check_branch
        %186 = sbr.rel (%p184) target = $region16
      $region15: #{tpu_custom_call.1} parent=5 // pred_region
        // Predicated region
        $region17: #{tpu_custom_call.1} parent=15 // pred_check
          %p187 = pneg %p56
        $region18: #{tpu_custom_call.1} parent=15 // pred_check_branch
          %189 = sbr.rel (%p187) target = $region20
        $region19: #{tpu_custom_call.1} parent=15 // pred_region
          %s190 = sand.u32 %s46, 1
          %s191 = scalar_lea.sflag [#allocation3], %s190
          %s192 = sand.u32 %s46, 1
          %s193 = smul.addr %s192, 2
          %s194 = scalar_lea.vmem [#allocation2], %s193
          %196 = vsyncadd %s191, 0
          %s197 = sadd.s32 %s30, %s29
          %s198 = smul.addr %s197, 2
          %s199 = scalar_lea.hbm %s0, %s198
          %s201 = sshll.u32 %s199, 4
          %s202 = int_to_ptr.hbm [resolvable:$true] %s201
          %s203 = sshll.u32 %s194, 4
          %s204 = int_to_ptr.vmem [resolvable:$true] %s203
          %206 = dma.hbm_to_vmem [thread:$0]  %s202, 32, %s204, %s191
        $region20: #{tpu_custom_call.1} parent=15 // pred_fallthru
          _
        // Predicated region
        $region21: #{tpu_custom_call.1} parent=15 // pred_check
          %p207 = pneg %p82
        $region22: #{tpu_custom_call.1} parent=15 // pred_check_branch
          %209 = sbr.rel (%p207) target = $region24
        $region23: #{tpu_custom_call.1} parent=15 // pred_region
          %s210 = sand.u32 %s22, 1
          %s211 = scalar_lea.sflag [#allocation6], %s210
          %s212 = sand.u32 %s72, 1
          %s213 = smul.addr %s212, 64
          %s214 = scalar_lea.vmem [#allocation5], %s213
          %216 = vsyncadd %s211, 0
          %s217 = smul.addr %s29, 8
          %s218 = smul.addr %s217, 8
          %s219 = scalar_lea.hbm %s1, %s218
          %s221 = sshll.u32 %s219, 4
          %s222 = int_to_ptr.hbm [resolvable:$true] %s221
          %s223 = sshll.u32 %s214, 4
          %s224 = int_to_ptr.vmem [resolvable:$true] %s223
          %226 = dma.hbm_to_vmem [thread:$0]  %s222, 1024, %s224, %s211
        $region24: #{tpu_custom_call.1} parent=15 // pred_fallthru
          _
        // Predicated region
        $region25: #{tpu_custom_call.1} parent=15 // pred_check
          %p227 = pneg %p108
        $region26: #{tpu_custom_call.1} parent=15 // pred_check_branch
          %229 = sbr.rel (%p227) target = $region28
        $region27: #{tpu_custom_call.1} parent=15 // pred_region
          %s230 = sand.u32 %s22, 1
          %s231 = scalar_lea.sflag [#allocation6], %s230
          %s232 = sand.u32 %s98, 1
          %s233 = smul.addr %s232, 16
          %s234 = scalar_lea.vmem [#allocation7], %s233
          %236 = vsyncadd %s231, 0
          %s237 = smul.addr %s29, 2
          %s238 = smul.addr %s237, 8
          %s239 = scalar_lea.hbm %s2, %s238
          %s241 = sshll.u32 %s239, 4
          %s242 = int_to_ptr.hbm [resolvable:$true] %s241
          %s243 = sshll.u32 %s234, 4
          %s244 = int_to_ptr.vmem [resolvable:$true] %s243
          %246 = dma.hbm_to_vmem [thread:$0]  %s242, 256, %s244, %s231
        $region28: #{tpu_custom_call.1} parent=15 // pred_fallthru
          _
        // Predicated region
        $region29: #{tpu_custom_call.1} parent=15 // pred_check
          %p247 = pneg %p134
        $region30: #{tpu_custom_call.1} parent=15 // pred_check_branch
          %249 = sbr.rel (%p247) target = $region32
        $region31: #{tpu_custom_call.1} parent=15 // pred_region
          %s250 = sand.u32 %s124, 1
          %s251 = scalar_lea.sflag [#allocation9], %s250
          %s252 = sand.u32 %s124, 1
          %s253 = smul.addr %s252, 8
          %s254 = scalar_lea.vmem [#allocation8], %s253
          %256 = vsyncadd %s251, 0
          %s257 = smul.addr %s29, 8
          %s258 = scalar_lea.hbm %s3, %s257
          %s260 = sshll.u32 %s258, 4
          %s261 = int_to_ptr.hbm [resolvable:$true] %s260
          %s262 = sshll.u32 %s254, 4
          %s263 = int_to_ptr.vmem [resolvable:$true] %s262
          %265 = dma.hbm_to_vmem [thread:$0]  %s261, 128, %s263, %s251
        $region32: #{tpu_custom_call.1} parent=15 // pred_fallthru
          _
      $region16: #{tpu_custom_call.1} parent=5 // pred_fallthru
        _
      %p266 = scmp.le.s32.totalorder 1, %s22
      %p267 = scmp.lt.s32.totalorder %s22, 5
      %p268 = pnand %p266, %p267
      %p269 = pneg %p268
      // Predicated region
      $region33: #{tpu_custom_call.1} parent=5 // pred_check
        _
      $region34: #{tpu_custom_call.1} parent=5 // pred_check_branch
        %271 = sbr.rel (%p268) target = $region36
      $region35: #{tpu_custom_call.1} parent=5 // pred_region
        %s272 = ssub.s32 %s22, 1
        %s273 = sand.u32 %s49, 1
        %s274 = scalar_lea.sflag [#allocation3], %s273
        %s275 = sand.u32 %s49, 1
        %s276 = smul.addr %s275, 2
        %s277 = scalar_lea.vmem [#allocation2], %s276
        // Predicated region
        $region37: #{tpu_custom_call.1} parent=35 // pred_check
          %p278 = pneg %p62
        $region38: #{tpu_custom_call.1} parent=35 // pred_check_branch
          %280 = sbr.rel (%p278) target = $region40
        $region39: #{tpu_custom_call.1} parent=35 // pred_region
          %282 = dma.done %s274, 32
        $region40: #{tpu_custom_call.1} parent=35 // pred_fallthru
          _
        %s283 = sand.u32 %s27, 1
        %s284 = scalar_lea.sflag [#allocation6], %s283
        %s285 = sand.u32 %s75, 1
        %s286 = smul.addr %s285, 64
        %s287 = scalar_lea.vmem [#allocation5], %s286
        // Predicated region
        $region41: #{tpu_custom_call.1} parent=35 // pred_check
          %p288 = pneg %p88
        $region42: #{tpu_custom_call.1} parent=35 // pred_check_branch
          %290 = sbr.rel (%p288) target = $region44
        $region43: #{tpu_custom_call.1} parent=35 // pred_region
          %292 = dma.done %s284, 1024
        $region44: #{tpu_custom_call.1} parent=35 // pred_fallthru
          _
        %s293 = sand.u32 %s27, 1
        %s294 = scalar_lea.sflag [#allocation6], %s293
        %s295 = sand.u32 %s101, 1
        %s296 = smul.addr %s295, 16
        %s297 = scalar_lea.vmem [#allocation7], %s296
        // Predicated region
        $region45: #{tpu_custom_call.1} parent=35 // pred_check
          %p298 = pneg %p114
        $region46: #{tpu_custom_call.1} parent=35 // pred_check_branch
          %300 = sbr.rel (%p298) target = $region48
        $region47: #{tpu_custom_call.1} parent=35 // pred_region
          %302 = dma.done %s294, 256
        $region48: #{tpu_custom_call.1} parent=35 // pred_fallthru
          _
        %s303 = sand.u32 %s127, 1
        %s304 = scalar_lea.sflag [#allocation9], %s303
        %s305 = sand.u32 %s127, 1
        %s306 = smul.addr %s305, 8
        %s307 = scalar_lea.vmem [#allocation8], %s306
        // Predicated region
        $region49: #{tpu_custom_call.1} parent=35 // pred_check
          %p308 = pneg %p140
        $region50: #{tpu_custom_call.1} parent=35 // pred_check_branch
          %310 = sbr.rel (%p308) target = $region52
        $region51: #{tpu_custom_call.1} parent=35 // pred_region
          %312 = dma.done %s304, 128
        $region52: #{tpu_custom_call.1} parent=35 // pred_fallthru
          _
        %s313 = sand.u32 %s49, 1
        %s314 = scalar_lea.sflag [#allocation3], %s313
        %s315 = sand.u32 %s49, 1
        %s316 = smul.addr %s315, 2
        %s317 = scalar_lea.vmem [#allocation2], %s316
        %p318 = pneg %p62
        %p319 = pneg %p59
        %s320 = sand.u32 %s27, 1
        %s321 = scalar_lea.sflag [#allocation6], %s320
        %s322 = sand.u32 %s75, 1
        %s323 = smul.addr %s322, 64
        %s324 = scalar_lea.vmem [#allocation5], %s323
        %p325 = pneg %p88
        %p326 = pneg %p85
        %s327 = sand.u32 %s27, 1
        %s328 = scalar_lea.sflag [#allocation6], %s327
        %s329 = sand.u32 %s101, 1
        %s330 = smul.addr %s329, 16
        %s331 = scalar_lea.vmem [#allocation7], %s330
        %p332 = pneg %p114
        %p333 = pneg %p111
        %s334 = sand.u32 %s127, 1
        %s335 = scalar_lea.sflag [#allocation9], %s334
        %s336 = sand.u32 %s127, 1
        %s337 = smul.addr %s336, 8
        %s338 = scalar_lea.vmem [#allocation8], %s337
        %p339 = pneg %p140
        %p340 = pneg %p137
        %p341 = pneg %p168
        %p342 = pneg %p165
        %s343 = sand.u32 %s155, 1
        %s344 = scalar_lea.sflag [#allocation4], %s343
        %s345 = sand.u32 %s155, 1
        %s346 = smul.addr %s345, 8
        %s347 = scalar_lea.vmem [#allocation10], %s346
        %v348 = vld [vmem:[%s277] sm:$0x1]
        %v349 = vld [vmem:[%s277 + $0x1] sm:$0x1]
        %v350 = vadd.f32 %v348, 1.0
        %v351 = vmul.f32 %v350, 15.5
        %v352 = vadd.f32 %v349, 1.0
        %v353 = vmul.f32 %v352, 15.5
        %v354 = vmax.f32 %v351, 0.0
        %v355 = vmin.f32 %v354, 31.0
        %v356 = vmax.f32 %v353, 0.0
        %v357 = vmin.f32 %v356, 31.0
        %v358 = vfloor.f32 %v355
        %v359 = vfloor.f32 %v357
        %v360 = vsub.f32 %v355, %v358
        %v361 = vsub.f32 1.0, %v360
        %v362 = vsub.f32 %v357, %v359
        %v363 = vsub.f32 1.0, %v362
        %v364 = vcvt.f32.s32.to.zero.pseudo %v358
        %v365 = vcvt.f32.s32.to.zero.pseudo %v359
        %v366 = vadd.s32 %v364, 1
        %vm367 = vcmp.lt.s32.totalorder %v366, 31
        %v368 = vsel %vm367, %v366, 31
        %v369 = vadd.s32 %v365, 1
        %vm370 = vcmp.lt.s32.totalorder %v369, 31
        %v371 = vsel %vm370, %v369, 31
        %v372 = vlaneseq
        %v373 = vshrl.u32 %v372, 7
        %v374 = vadd.s32 %v373, 8
        %v375 = vadd.s32 %v373, 16
        %v376 = vadd.s32 %v373, 24
        %v377 = vperm.slane %v365, 0
        %vm378 = vcmp.eq.s32.totalorder %v373, %v377
        %vm379 = vcmp.eq.s32.totalorder %v374, %v377
        %vm380 = vcmp.eq.s32.totalorder %v375, %v377
        %vm381 = vcmp.eq.s32.totalorder %v376, %v377
        %v382 = vperm.slane %v363, 0
        %v383 = vsel %vm378, %v382, 0.0
        %v384 = vsel %vm379, %v382, 0.0
        %v385 = vsel %vm380, %v382, 0.0
        %v386 = vsel %vm381, %v382, 0.0
        %v387 = vperm.slane %v371, 0
        %vm388 = vcmp.eq.s32.totalorder %v373, %v387
        %vm389 = vcmp.eq.s32.totalorder %v374, %v387
        %vm390 = vcmp.eq.s32.totalorder %v375, %v387
        %vm391 = vcmp.eq.s32.totalorder %v376, %v387
        %v392 = vperm.slane %v362, 0
        %v393 = vsel %vm388, %v392, 0.0
        %v394 = vsel %vm389, %v392, 0.0
        %v395 = vsel %vm390, %v392, 0.0
        %v396 = vsel %vm391, %v392, 0.0
        %v397 = vadd.f32 %v383, %v393
        %v398 = vadd.f32 %v384, %v394
        %v399 = vadd.f32 %v385, %v395
        %v400 = vadd.f32 %v386, %v396
        %v401 = vperm.slane %v364, 0
        %vm402 = vcmp.eq.s32.totalorder %v373, %v401
        %vm403 = vcmp.eq.s32.totalorder %v374, %v401
        %vm404 = vcmp.eq.s32.totalorder %v375, %v401
        %vm405 = vcmp.eq.s32.totalorder %v376, %v401
        %v406 = vperm.slane %v361, 0
        %v407 = vsel %vm402, %v406, 0.0
        %v408 = vsel %vm403, %v406, 0.0
        %v409 = vsel %vm404, %v406, 0.0
        %v410 = vsel %vm405, %v406, 0.0
        %v411 = vperm.slane %v368, 0
        %vm412 = vcmp.eq.s32.totalorder %v373, %v411
        %vm413 = vcmp.eq.s32.totalorder %v374, %v411
        %vm414 = vcmp.eq.s32.totalorder %v375, %v411
        %vm415 = vcmp.eq.s32.totalorder %v376, %v411
        %v416 = vperm.slane %v360, 0
        %v417 = vsel %vm412, %v416, 0.0
        %v418 = vsel %vm413, %v416, 0.0
        %v419 = vsel %vm414, %v416, 0.0
        %v420 = vsel %vm415, %v416, 0.0
        %v421 = vadd.f32 %v407, %v417
        %v422 = vadd.f32 %v408, %v418
        %v423 = vadd.f32 %v409, %v419
        %v424 = vadd.f32 %v410, %v420
        %v429 = vrot.slane %v397, 1
        %v430 = vrot.slane %v397, 2
        %v431 = vrot.slane %v397, 3
        %v432 = vrot.slane %v397, 4
        %v433 = vrot.slane %v397, 5
        %v434 = vrot.slane %v397, 6
        %v435 = vrot.slane %v397, 7
        %v436 = vrot.slane %v398, 1
        %v437 = vrot.slane %v398, 2
        %v438 = vrot.slane %v398, 3
        %v439 = vrot.slane %v398, 4
        %v440 = vrot.slane %v398, 5
        %v441 = vrot.slane %v398, 6
        %v442 = vrot.slane %v398, 7
        %v443 = vrot.slane %v399, 1
        %v444 = vrot.slane %v399, 2
        %v445 = vrot.slane %v399, 3
        %v446 = vrot.slane %v399, 4
        %v447 = vrot.slane %v399, 5
        %v448 = vrot.slane %v399, 6
        %v449 = vrot.slane %v399, 7
        %v450 = vrot.slane %v400, 1
        %v451 = vrot.slane %v400, 2
        %v452 = vrot.slane %v400, 3
        %v453 = vrot.slane %v400, 4
        %v454 = vrot.slane %v400, 5
        %v455 = vrot.slane %v400, 6
        %v456 = vrot.slane %v400, 7
        %v457 = vperm.slane %v397, 0
        %v458 = vperm.slane %v429, 0
        %v459 = vperm.slane %v430, 0
        %v460 = vperm.slane %v431, 0
        %v461 = vperm.slane %v432, 0
        %v462 = vperm.slane %v433, 0
        %v463 = vperm.slane %v434, 0
        %v464 = vperm.slane %v435, 0
        %v465 = vperm.slane %v398, 0
        %v466 = vperm.slane %v436, 0
        %v467 = vperm.slane %v437, 0
        %v468 = vperm.slane %v438, 0
        %v469 = vperm.slane %v439, 0
        %v470 = vperm.slane %v440, 0
        %v471 = vperm.slane %v441, 0
        %v472 = vperm.slane %v442, 0
        %v473 = vperm.slane %v399, 0
        %v474 = vperm.slane %v443, 0
        %v475 = vperm.slane %v444, 0
        %v476 = vperm.slane %v445, 0
        %v477 = vperm.slane %v446, 0
        %v478 = vperm.slane %v447, 0
        %v479 = vperm.slane %v448, 0
        %v480 = vperm.slane %v449, 0
        %v481 = vperm.slane %v400, 0
        %v482 = vperm.slane %v450, 0
        %v483 = vperm.slane %v451, 0
        %v484 = vperm.slane %v452, 0
        %v485 = vperm.slane %v453, 0
        %v486 = vperm.slane %v454, 0
        %v487 = vperm.slane %v455, 0
        %v488 = vperm.slane %v456, 0
        %v521 = vmul.f32 %v457, %v421
        %v522 = vmul.f32 %v457, %v422
        %v523 = vmul.f32 %v457, %v423
        %v524 = vmul.f32 %v457, %v424
        %v525 = vmul.f32 %v458, %v421
        %v526 = vmul.f32 %v458, %v422
        %v527 = vmul.f32 %v458, %v423
        %v528 = vmul.f32 %v458, %v424
        %v529 = vmul.f32 %v459, %v421
        %v530 = vmul.f32 %v459, %v422
        %v531 = vmul.f32 %v459, %v423
        %v532 = vmul.f32 %v459, %v424
        %v533 = vmul.f32 %v460, %v421
        %v534 = vmul.f32 %v460, %v422
        %v535 = vmul.f32 %v460, %v423
        %v536 = vmul.f32 %v460, %v424
        %v537 = vmul.f32 %v461, %v421
        %v538 = vmul.f32 %v461, %v422
        %v539 = vmul.f32 %v461, %v423
        %v540 = vmul.f32 %v461, %v424
        %v541 = vmul.f32 %v462, %v421
        %v542 = vmul.f32 %v462, %v422
        %v543 = vmul.f32 %v462, %v423
        %v544 = vmul.f32 %v462, %v424
        %v545 = vmul.f32 %v463, %v421
        %v546 = vmul.f32 %v463, %v422
        %v547 = vmul.f32 %v463, %v423
        %v548 = vmul.f32 %v463, %v424
        %v549 = vmul.f32 %v464, %v421
        %v550 = vmul.f32 %v464, %v422
        %v551 = vmul.f32 %v464, %v423
        %v552 = vmul.f32 %v464, %v424
        %v553 = vmul.f32 %v465, %v421
        %v554 = vmul.f32 %v465, %v422
        %v555 = vmul.f32 %v465, %v423
        %v556 = vmul.f32 %v465, %v424
        %v557 = vmul.f32 %v466, %v421
        %v558 = vmul.f32 %v466, %v422
        %v559 = vmul.f32 %v466, %v423
        %v560 = vmul.f32 %v466, %v424
        %v561 = vmul.f32 %v467, %v421
        %v562 = vmul.f32 %v467, %v422
        %v563 = vmul.f32 %v467, %v423
        %v564 = vmul.f32 %v467, %v424
        %v565 = vmul.f32 %v468, %v421
        %v566 = vmul.f32 %v468, %v422
        %v567 = vmul.f32 %v468, %v423
        %v568 = vmul.f32 %v468, %v424
        %v569 = vmul.f32 %v469, %v421
        %v570 = vmul.f32 %v469, %v422
        %v571 = vmul.f32 %v469, %v423
        %v572 = vmul.f32 %v469, %v424
        %v573 = vmul.f32 %v470, %v421
        %v574 = vmul.f32 %v470, %v422
        %v575 = vmul.f32 %v470, %v423
        %v576 = vmul.f32 %v470, %v424
        %v577 = vmul.f32 %v471, %v421
        %v578 = vmul.f32 %v471, %v422
        %v579 = vmul.f32 %v471, %v423
        %v580 = vmul.f32 %v471, %v424
        %v581 = vmul.f32 %v472, %v421
        %v582 = vmul.f32 %v472, %v422
        %v583 = vmul.f32 %v472, %v423
        %v584 = vmul.f32 %v472, %v424
        %v585 = vmul.f32 %v473, %v421
        %v586 = vmul.f32 %v473, %v422
        %v587 = vmul.f32 %v473, %v423
        %v588 = vmul.f32 %v473, %v424
        %v589 = vmul.f32 %v474, %v421
        %v590 = vmul.f32 %v474, %v422
        %v591 = vmul.f32 %v474, %v423
        %v592 = vmul.f32 %v474, %v424
        %v593 = vmul.f32 %v475, %v421
        %v594 = vmul.f32 %v475, %v422
        %v595 = vmul.f32 %v475, %v423
        %v596 = vmul.f32 %v475, %v424
        %v597 = vmul.f32 %v476, %v421
        %v598 = vmul.f32 %v476, %v422
        %v599 = vmul.f32 %v476, %v423
        %v600 = vmul.f32 %v476, %v424
        %v601 = vmul.f32 %v477, %v421
        %v602 = vmul.f32 %v477, %v422
        %v603 = vmul.f32 %v477, %v423
        %v604 = vmul.f32 %v477, %v424
        %v605 = vmul.f32 %v478, %v421
        %v606 = vmul.f32 %v478, %v422
        %v607 = vmul.f32 %v478, %v423
        %v608 = vmul.f32 %v478, %v424
        %v609 = vmul.f32 %v479, %v421
        %v610 = vmul.f32 %v479, %v422
        %v611 = vmul.f32 %v479, %v423
        %v612 = vmul.f32 %v479, %v424
        %v613 = vmul.f32 %v480, %v421
        %v614 = vmul.f32 %v480, %v422
        %v615 = vmul.f32 %v480, %v423
        %v616 = vmul.f32 %v480, %v424
        %v617 = vmul.f32 %v481, %v421
        %v618 = vmul.f32 %v481, %v422
        %v619 = vmul.f32 %v481, %v423
        %v620 = vmul.f32 %v481, %v424
        %v621 = vmul.f32 %v482, %v421
        %v622 = vmul.f32 %v482, %v422
        %v623 = vmul.f32 %v482, %v423
        %v624 = vmul.f32 %v482, %v424
        %v625 = vmul.f32 %v483, %v421
        %v626 = vmul.f32 %v483, %v422
        %v627 = vmul.f32 %v483, %v423
        %v628 = vmul.f32 %v483, %v424
        %v629 = vmul.f32 %v484, %v421
        %v630 = vmul.f32 %v484, %v422
        %v631 = vmul.f32 %v484, %v423
        %v632 = vmul.f32 %v484, %v424
        %v633 = vmul.f32 %v485, %v421
        %v634 = vmul.f32 %v485, %v422
        %v635 = vmul.f32 %v485, %v423
        %v636 = vmul.f32 %v485, %v424
        %v637 = vmul.f32 %v486, %v421
        %v638 = vmul.f32 %v486, %v422
        %v639 = vmul.f32 %v486, %v423
        %v640 = vmul.f32 %v486, %v424
        %v641 = vmul.f32 %v487, %v421
        %v642 = vmul.f32 %v487, %v422
        %v643 = vmul.f32 %v487, %v423
        %v644 = vmul.f32 %v487, %v424
        %v645 = vmul.f32 %v488, %v421
        %v646 = vmul.f32 %v488, %v422
        %v647 = vmul.f32 %v488, %v423
        %v648 = vmul.f32 %v488, %v424
        %v649 = vld [vmem:[%s287] sm:$0xff]
        %v650 = vld [vmem:[%s287 + $0x8] sm:$0xff]
        %v651 = vld [vmem:[%s287 + $0x10] sm:$0xff]
        %v652 = vld [vmem:[%s287 + $0x18] sm:$0xff]
        %v653 = vld [vmem:[%s287 + $0x20] sm:$0xff]
        %v654 = vld [vmem:[%s287 + $0x28] sm:$0xff]
        %v655 = vld [vmem:[%s287 + $0x30] sm:$0xff]
        %v656 = vld [vmem:[%s287 + $0x38] sm:$0xff]
        %v657 = vmul.f32 %v350, 7.5
        %v658 = vmul.f32 %v352, 7.5
        %v659 = vmax.f32 %v657, 0.0
        %v660 = vmin.f32 %v659, 15.0
        %v661 = vmax.f32 %v658, 0.0
        %v662 = vmin.f32 %v661, 15.0
        %v663 = vfloor.f32 %v660
        %v664 = vfloor.f32 %v662
        %v665 = vsub.f32 %v660, %v663
        %v666 = vsub.f32 1.0, %v665
        %v667 = vsub.f32 %v662, %v664
        %v668 = vsub.f32 1.0, %v667
        %v669 = vcvt.f32.s32.to.zero.pseudo %v663
        %v670 = vcvt.f32.s32.to.zero.pseudo %v664
        %v671 = vadd.s32 %v669, 1
        %vm672 = vcmp.lt.s32.totalorder %v671, 15
        %v673 = vsel %vm672, %v671, 15
        %v674 = vadd.s32 %v670, 1
        %vm675 = vcmp.lt.s32.totalorder %v674, 15
        %v676 = vsel %vm675, %v674, 15
        %v677 = vperm.slane %v670, 0
        %vm678 = vcmp.eq.s32.totalorder %v373, %v677
        %vm679 = vcmp.eq.s32.totalorder %v374, %v677
        %v680 = vperm.slane %v668, 0
        %v681 = vsel %vm678, %v680, 0.0
        %v682 = vsel %vm679, %v680, 0.0
        %v683 = vperm.slane %v676, 0
        %vm684 = vcmp.eq.s32.totalorder %v373, %v683
        %vm685 = vcmp.eq.s32.totalorder %v374, %v683
        %v686 = vperm.slane %v667, 0
        %v687 = vsel %vm684, %v686, 0.0
        %v688 = vsel %vm685, %v686, 0.0
        %v689 = vadd.f32 %v681, %v687
        %v690 = vadd.f32 %v682, %v688
        %v691 = vperm.slane %v669, 0
        %vm692 = vcmp.eq.s32.totalorder %v373, %v691
        %vm693 = vcmp.eq.s32.totalorder %v374, %v691
        %v694 = vperm.slane %v666, 0
        %v695 = vsel %vm692, %v694, 0.0
        %v696 = vsel %vm693, %v694, 0.0
        %v697 = vperm.slane %v673, 0
        %vm698 = vcmp.eq.s32.totalorder %v373, %v697
        %vm699 = vcmp.eq.s32.totalorder %v374, %v697
        %v700 = vperm.slane %v665, 0
        %v701 = vsel %vm698, %v700, 0.0
        %v702 = vsel %vm699, %v700, 0.0
        %v703 = vadd.f32 %v695, %v701
        %v704 = vadd.f32 %v696, %v702
        %v707 = vrot.slane %v689, 1
        %v708 = vrot.slane %v689, 2
        %v709 = vrot.slane %v689, 3
        %v710 = vrot.slane %v689, 4
        %v711 = vrot.slane %v689, 5
        %v712 = vrot.slane %v689, 6
        %v713 = vrot.slane %v689, 7
        %v714 = vrot.slane %v690, 1
        %v715 = vrot.slane %v690, 2
        %v716 = vrot.slane %v690, 3
        %v717 = vrot.slane %v690, 4
        %v718 = vrot.slane %v690, 5
        %v719 = vrot.slane %v690, 6
        %v720 = vrot.slane %v690, 7
        %v721 = vperm.slane %v689, 0
        %v722 = vperm.slane %v707, 0
        %v723 = vperm.slane %v708, 0
        %v724 = vperm.slane %v709, 0
        %v725 = vperm.slane %v710, 0
        %v726 = vperm.slane %v711, 0
        %v727 = vperm.slane %v712, 0
        %v728 = vperm.slane %v713, 0
        %v729 = vperm.slane %v690, 0
        %v730 = vperm.slane %v714, 0
        %v731 = vperm.slane %v715, 0
        %v732 = vperm.slane %v716, 0
        %v733 = vperm.slane %v717, 0
        %v734 = vperm.slane %v718, 0
        %v735 = vperm.slane %v719, 0
        %v736 = vperm.slane %v720, 0
        %v753 = vmul.f32 %v721, %v703
        %v754 = vmul.f32 %v721, %v704
        %v755 = vmul.f32 %v722, %v703
        %v756 = vmul.f32 %v722, %v704
        %v757 = vmul.f32 %v723, %v703
        %v758 = vmul.f32 %v723, %v704
        %v759 = vmul.f32 %v724, %v703
        %v760 = vmul.f32 %v724, %v704
        %v761 = vmul.f32 %v725, %v703
        %v762 = vmul.f32 %v725, %v704
        %v763 = vmul.f32 %v726, %v703
        %v764 = vmul.f32 %v726, %v704
        %v765 = vmul.f32 %v727, %v703
        %v766 = vmul.f32 %v727, %v704
        %v767 = vmul.f32 %v728, %v703
        %v768 = vmul.f32 %v728, %v704
        %v769 = vmul.f32 %v729, %v703
        %v770 = vmul.f32 %v729, %v704
        %v771 = vmul.f32 %v730, %v703
        %v772 = vmul.f32 %v730, %v704
        %v773 = vmul.f32 %v731, %v703
        %v774 = vmul.f32 %v731, %v704
        %v775 = vmul.f32 %v732, %v703
        %v776 = vmul.f32 %v732, %v704
        %v777 = vmul.f32 %v733, %v703
        %v778 = vmul.f32 %v733, %v704
        %v779 = vmul.f32 %v734, %v703
        %v780 = vmul.f32 %v734, %v704
        %v781 = vmul.f32 %v735, %v703
        %v782 = vmul.f32 %v735, %v704
        %v783 = vmul.f32 %v736, %v703
        %v784 = vmul.f32 %v736, %v704
        %v785 = vld [vmem:[%s297] sm:$0xff]
        %v786 = vld [vmem:[%s297 + $0x8] sm:$0xff]
        %787 = vmatpush.msra.mxu0 %v768
        %788 = vmatpush.msra.mxu0 %v767
        %789 = vmatpush.msra.mxu0 %v766
        %790 = vmatpush.msra.mxu0 %v765
        %791 = vmatpush.msra.mxu0 %v764
        %792 = vmatpush.msra.mxu0 %v763
        %793 = vmatpush.msra.mxu0 %v762
        %794 = vmatpush.msra.mxu0 %v761
        %795 = vmatpush.msra.mxu0 %v760
        %796 = vmatpush.msra.mxu0 %v759
        %797 = vmatpush.msra.mxu0 %v758
        %798 = vmatpush.msra.mxu0 %v757
        %799 = vmatpush.msra.mxu0 %v756
        %800 = vmatpush.msra.mxu0 %v755
        %801 = vmatpush.msra.mxu0 %v754
        %802 = vmatpush.msra.mxu0 %v753
        %803 = vmatmul.f32.gmra.mxu0 %v785
        %v804 = vpop.f32.mrf.mxu0
        %v805 = vadd.f32 0.0, %v804
        %806 = vdwg.mxu0
        %807 = vmatpush.msra.mxu0 %v784
        %808 = vmatpush.msra.mxu0 %v783
        %809 = vmatpush.msra.mxu0 %v782
        %810 = vmatpush.msra.mxu0 %v781
        %811 = vmatpush.msra.mxu0 %v780
        %812 = vmatpush.msra.mxu0 %v779
        %813 = vmatpush.msra.mxu0 %v778
        %814 = vmatpush.msra.mxu0 %v777
        %815 = vmatpush.msra.mxu0 %v776
        %816 = vmatpush.msra.mxu0 %v775
        %817 = vmatpush.msra.mxu0 %v774
        %818 = vmatpush.msra.mxu0 %v773
        %819 = vmatpush.msra.mxu0 %v772
        %820 = vmatpush.msra.mxu0 %v771
        %821 = vmatpush.msra.mxu0 %v770
        %822 = vmatpush.msra.mxu0 %v769
        %823 = vmatmul.f32.gmra.mxu0 %v786
        %v824 = vpop.f32.mrf.mxu0
        %v825 = vadd.f32 %v805, %v824
        %826 = vdwg.mxu0
        %827 = vmatpush.msra.mxu0 %v536
        %828 = vmatpush.msra.mxu0 %v535
        %829 = vmatpush.msra.mxu0 %v534
        %830 = vmatpush.msra.mxu0 %v533
        %831 = vmatpush.msra.mxu0 %v532
        %832 = vmatpush.msra.mxu0 %v531
        %833 = vmatpush.msra.mxu0 %v530
        %834 = vmatpush.msra.mxu0 %v529
        %835 = vmatpush.msra.mxu0 %v528
        %836 = vmatpush.msra.mxu0 %v527
        %837 = vmatpush.msra.mxu0 %v526
        %838 = vmatpush.msra.mxu0 %v525
        %839 = vmatpush.msra.mxu0 %v524
        %840 = vmatpush.msra.mxu0 %v523
        %841 = vmatpush.msra.mxu0 %v522
        %842 = vmatpush.msra.mxu0 %v521
        %843 = vmatmul.f32.gmra.mxu0 %v649
        %v844 = vpop.f32.mrf.mxu0
        %v845 = vadd.f32 %v825, %v844
        %846 = vdwg.mxu0
        %847 = vmatpush.msra.mxu0 %v552
        %848 = vmatpush.msra.mxu0 %v551
        %849 = vmatpush.msra.mxu0 %v550
        %850 = vmatpush.msra.mxu0 %v549
        %851 = vmatpush.msra.mxu0 %v548
        %852 = vmatpush.msra.mxu0 %v547
        %853 = vmatpush.msra.mxu0 %v546
        %854 = vmatpush.msra.mxu0 %v545
        %855 = vmatpush.msra.mxu0 %v544
        %856 = vmatpush.msra.mxu0 %v543
        %857 = vmatpush.msra.mxu0 %v542
        %858 = vmatpush.msra.mxu0 %v541
        %859 = vmatpush.msra.mxu0 %v540
        %860 = vmatpush.msra.mxu0 %v539
        %861 = vmatpush.msra.mxu0 %v538
        %862 = vmatpush.msra.mxu0 %v537
        %863 = vmatmul.f32.gmra.mxu0 %v650
        %v864 = vpop.f32.mrf.mxu0
        %v865 = vadd.f32 %v845, %v864
        %866 = vdwg.mxu0
        %867 = vmatpush.msra.mxu0 %v568
        %868 = vmatpush.msra.mxu0 %v567
        %869 = vmatpush.msra.mxu0 %v566
        %870 = vmatpush.msra.mxu0 %v565
        %871 = vmatpush.msra.mxu0 %v564
        %872 = vmatpush.msra.mxu0 %v563
        %873 = vmatpush.msra.mxu0 %v562
        %874 = vmatpush.msra.mxu0 %v561
        %875 = vmatpush.msra.mxu0 %v560
        %876 = vmatpush.msra.mxu0 %v559
        %877 = vmatpush.msra.mxu0 %v558
        %878 = vmatpush.msra.mxu0 %v557
        %879 = vmatpush.msra.mxu0 %v556
        %880 = vmatpush.msra.mxu0 %v555
        %881 = vmatpush.msra.mxu0 %v554
        %882 = vmatpush.msra.mxu0 %v553
        %883 = vmatmul.f32.gmra.mxu0 %v651
        %v884 = vpop.f32.mrf.mxu0
        %v885 = vadd.f32 %v865, %v884
        %886 = vdwg.mxu0
        %887 = vmatpush.msra.mxu0 %v584
        %888 = vmatpush.msra.mxu0 %v583
        %889 = vmatpush.msra.mxu0 %v582
        %890 = vmatpush.msra.mxu0 %v581
        %891 = vmatpush.msra.mxu0 %v580
        %892 = vmatpush.msra.mxu0 %v579
        %893 = vmatpush.msra.mxu0 %v578
        %894 = vmatpush.msra.mxu0 %v577
        %895 = vmatpush.msra.mxu0 %v576
        %896 = vmatpush.msra.mxu0 %v575
        %897 = vmatpush.msra.mxu0 %v574
        %898 = vmatpush.msra.mxu0 %v573
        %899 = vmatpush.msra.mxu0 %v572
        %900 = vmatpush.msra.mxu0 %v571
        %901 = vmatpush.msra.mxu0 %v570
        %902 = vmatpush.msra.mxu0 %v569
        %903 = vmatmul.f32.gmra.mxu0 %v652
        %v904 = vpop.f32.mrf.mxu0
        %v905 = vadd.f32 %v885, %v904
        %906 = vdwg.mxu0
        %907 = vmatpush.msra.mxu0 %v600
        %908 = vmatpush.msra.mxu0 %v599
        %909 = vmatpush.msra.mxu0 %v598
        %910 = vmatpush.msra.mxu0 %v597
        %911 = vmatpush.msra.mxu0 %v596
        %912 = vmatpush.msra.mxu0 %v595
        %913 = vmatpush.msra.mxu0 %v594
        %914 = vmatpush.msra.mxu0 %v593
        %915 = vmatpush.msra.mxu0 %v592
        %916 = vmatpush.msra.mxu0 %v591
        %917 = vmatpush.msra.mxu0 %v590
        %918 = vmatpush.msra.mxu0 %v589
        %919 = vmatpush.msra.mxu0 %v588
        %920 = vmatpush.msra.mxu0 %v587
        %921 = vmatpush.msra.mxu0 %v586
        %922 = vmatpush.msra.mxu0 %v585
        %923 = vmatmul.f32.gmra.mxu0 %v653
        %v924 = vpop.f32.mrf.mxu0
        %v925 = vadd.f32 %v905, %v924
        %926 = vdwg.mxu0
        %927 = vmatpush.msra.mxu0 %v616
        %928 = vmatpush.msra.mxu0 %v615
        %929 = vmatpush.msra.mxu0 %v614
        %930 = vmatpush.msra.mxu0 %v613
        %931 = vmatpush.msra.mxu0 %v612
        %932 = vmatpush.msra.mxu0 %v611
        %933 = vmatpush.msra.mxu0 %v610
        %934 = vmatpush.msra.mxu0 %v609
        %935 = vmatpush.msra.mxu0 %v608
        %936 = vmatpush.msra.mxu0 %v607
        %937 = vmatpush.msra.mxu0 %v606
        %938 = vmatpush.msra.mxu0 %v605
        %939 = vmatpush.msra.mxu0 %v604
        %940 = vmatpush.msra.mxu0 %v603
        %941 = vmatpush.msra.mxu0 %v602
        %942 = vmatpush.msra.mxu0 %v601
        %943 = vmatmul.f32.gmra.mxu0 %v654
        %v944 = vpop.f32.mrf.mxu0
        %v945 = vadd.f32 %v925, %v944
        %946 = vdwg.mxu0
        %947 = vmatpush.msra.mxu0 %v632
        %948 = vmatpush.msra.mxu0 %v631
        %949 = vmatpush.msra.mxu0 %v630
        %950 = vmatpush.msra.mxu0 %v629
        %951 = vmatpush.msra.mxu0 %v628
        %952 = vmatpush.msra.mxu0 %v627
        %953 = vmatpush.msra.mxu0 %v626
        %954 = vmatpush.msra.mxu0 %v625
        %955 = vmatpush.msra.mxu0 %v624
        %956 = vmatpush.msra.mxu0 %v623
        %957 = vmatpush.msra.mxu0 %v622
        %958 = vmatpush.msra.mxu0 %v621
        %959 = vmatpush.msra.mxu0 %v620
        %960 = vmatpush.msra.mxu0 %v619
        %961 = vmatpush.msra.mxu0 %v618
        %962 = vmatpush.msra.mxu0 %v617
        %963 = vmatmul.f32.gmra.mxu0 %v655
        %v964 = vpop.f32.mrf.mxu0
        %v965 = vadd.f32 %v945, %v964
        %966 = vdwg.mxu0
        %967 = vmatpush.msra.mxu0 %v648
        %968 = vmatpush.msra.mxu0 %v647
        %969 = vmatpush.msra.mxu0 %v646
        %970 = vmatpush.msra.mxu0 %v645
        %971 = vmatpush.msra.mxu0 %v644
        %972 = vmatpush.msra.mxu0 %v643
        %973 = vmatpush.msra.mxu0 %v642
        %974 = vmatpush.msra.mxu0 %v641
        %975 = vmatpush.msra.mxu0 %v640
        %976 = vmatpush.msra.mxu0 %v639
        %977 = vmatpush.msra.mxu0 %v638
        %978 = vmatpush.msra.mxu0 %v637
        %979 = vmatpush.msra.mxu0 %v636
        %980 = vmatpush.msra.mxu0 %v635
        %981 = vmatpush.msra.mxu0 %v634
        %982 = vmatpush.msra.mxu0 %v633
        %983 = vmatmul.f32.gmra.mxu0 %v656
        %v984 = vpop.f32.mrf.mxu0
        %v985 = vadd.f32 %v965, %v984
        %986 = vdwg.mxu0
        %v987 = vmul.f32 %v350, 3.5
        %v988 = vmul.f32 %v352, 3.5
        %v989 = vmax.f32 %v987, 0.0
        %v990 = vmin.f32 %v989, 7.0
        %v991 = vmax.f32 %v988, 0.0
        %v992 = vmin.f32 %v991, 7.0
        %v993 = vfloor.f32 %v990
        %v994 = vfloor.f32 %v992
        %v995 = vsub.f32 %v990, %v993
        %v996 = vsub.f32 1.0, %v995
        %v997 = vsub.f32 %v992, %v994
        %v998 = vsub.f32 1.0, %v997
        %v999 = vcvt.f32.s32.to.zero.pseudo %v993
        %v1000 = vcvt.f32.s32.to.zero.pseudo %v994
        %v1001 = vadd.s32 %v999, 1
        %vm1002 = vcmp.lt.s32.totalorder %v1001, 7
        %v1003 = vsel %vm1002, %v1001, 7
        %v1004 = vadd.s32 %v1000, 1
        %vm1005 = vcmp.lt.s32.totalorder %v1004, 7
        %v1006 = vsel %vm1005, %v1004, 7
        %v1007 = vperm.slane %v1000, 0
        %vm1008 = vcmp.eq.s32.totalorder %v373, %v1007
        %v1009 = vperm.slane %v998, 0
        %v1010 = vsel %vm1008, %v1009, 0.0
        %v1011 = vperm.slane %v1006, 0
        %vm1012 = vcmp.eq.s32.totalorder %v373, %v1011
        %v1013 = vperm.slane %v997, 0
        %v1014 = vsel %vm1012, %v1013, 0.0
        %v1015 = vadd.f32 %v1010, %v1014
        %v1016 = vperm.slane %v999, 0
        %vm1017 = vcmp.eq.s32.totalorder %v373, %v1016
        %v1018 = vperm.slane %v996, 0
        %v1019 = vsel %vm1017, %v1018, 0.0
        %v1020 = vperm.slane %v1003, 0
        %vm1021 = vcmp.eq.s32.totalorder %v373, %v1020
        %v1022 = vperm.slane %v995, 0
        %v1023 = vsel %vm1021, %v1022, 0.0
        %v1024 = vadd.f32 %v1019, %v1023
        %v1026 = vrot.slane %v1015, 1
        %v1027 = vrot.slane %v1015, 2
        %v1028 = vrot.slane %v1015, 3
        %v1029 = vrot.slane %v1015, 4
        %v1030 = vrot.slane %v1015, 5
        %v1031 = vrot.slane %v1015, 6
        %v1032 = vrot.slane %v1015, 7
        %v1033 = vperm.slane %v1015, 0
        %v1034 = vperm.slane %v1026, 0
        %v1035 = vperm.slane %v1027, 0
        %v1036 = vperm.slane %v1028, 0
        %v1037 = vperm.slane %v1029, 0
        %v1038 = vperm.slane %v1030, 0
        %v1039 = vperm.slane %v1031, 0
        %v1040 = vperm.slane %v1032, 0
        %v1049 = vmul.f32 %v1033, %v1024
        %v1050 = vmul.f32 %v1034, %v1024
        %v1051 = vmul.f32 %v1035, %v1024
        %v1052 = vmul.f32 %v1036, %v1024
        %v1053 = vmul.f32 %v1037, %v1024
        %v1054 = vmul.f32 %v1038, %v1024
        %v1055 = vmul.f32 %v1039, %v1024
        %v1056 = vmul.f32 %v1040, %v1024
        %v1057 = vld [vmem:[%s307] sm:$0xff]
        %vm1058 = vcmask 523264
        %v1060 = vsel %vm1058, %v1057, 0
        %1062 = vmatpush.msra.mxu0 0.0
        %1063 = vmatpush.msra.mxu0 0.0
        %1064 = vmatpush.msra.mxu0 0.0
        %1065 = vmatpush.msra.mxu0 0.0
        %1066 = vmatpush.msra.mxu0 0.0
        %1067 = vmatpush.msra.mxu0 0.0
        %1068 = vmatpush.msra.mxu0 0.0
        %1069 = vmatpush.msra.mxu0 0.0
        %1070 = vmatpush.msra.mxu0 %v1056
        %1071 = vmatpush.msra.mxu0 %v1055
        %1072 = vmatpush.msra.mxu0 %v1054
        %1073 = vmatpush.msra.mxu0 %v1053
        %1074 = vmatpush.msra.mxu0 %v1052
        %1075 = vmatpush.msra.mxu0 %v1051
        %1076 = vmatpush.msra.mxu0 %v1050
        %1077 = vmatpush.msra.mxu0 %v1049
        %1078 = vmatmul.f32.gmra.mxu0 %v1060
        %v1079 = vpop.f32.mrf.mxu0
        %v1080 = vadd.f32 0.0, %v1079
        %1081 = vdwg.mxu0
        %v1082 = vadd.f32 %v985, %v1080
        %1083 = vst [vmem:[%s347] sm:$0xff] %v1082
        %s1084 = sand.u32 %s155, 1
        %s1085 = scalar_lea.sflag [#allocation4], %s1084
        %s1086 = sand.u32 %s155, 1
        %s1087 = smul.addr %s1086, 8
        %s1088 = scalar_lea.vmem [#allocation10], %s1087
        // Predicated region
        $region53: #{tpu_custom_call.1} parent=35 // pred_check
          %p1089 = pneg %p165
        $region54: #{tpu_custom_call.1} parent=35 // pred_check_branch
          %1091 = sbr.rel (%p1089) target = $region56
        $region55: #{tpu_custom_call.1} parent=35 // pred_region
          %1093 = vsyncadd %s1085, 0
          %s1094 = sadd.s32 %s32, %s31
          %s1095 = smul.addr %s1094, 8
          %s1096 = scalar_lea.hbm %s4, %s1095
          %s1098 = sshll.u32 %s1088, 4
          %s1099 = int_to_ptr.vmem [resolvable:$true] %s1098
          %s1100 = sshll.u32 %s1096, 4
          %s1101 = int_to_ptr.hbm [resolvable:$true] %s1100
          %1103 = dma.vmem_to_hbm [thread:$0]  %s1099, 128, %s1101, %s1085
        $region56: #{tpu_custom_call.1} parent=35 // pred_fallthru
          _
      $region36: #{tpu_custom_call.1} parent=5 // pred_fallthru
        _
      %p1104 = scmp.le.s32.totalorder 2, %s22
      // Predicated region
      $region57: #{tpu_custom_call.1} parent=5 // pred_check
        %p1105 = pneg %p1104
      $region58: #{tpu_custom_call.1} parent=5 // pred_check_branch
        %1107 = sbr.rel (%p1105) target = $region60
      $region59: #{tpu_custom_call.1} parent=5 // pred_region
        %s1108 = ssub.s32 %s22, 2
        // Predicated region
        $region61: #{tpu_custom_call.1} parent=59 // pred_check
          %p1109 = pneg %p171
        $region62: #{tpu_custom_call.1} parent=59 // pred_check_branch
          %1111 = sbr.rel (%p1109) target = $region64
        $region63: #{tpu_custom_call.1} parent=59 // pred_region
          %s1112 = sand.u32 %s156, 1
          %s1113 = scalar_lea.sflag [#allocation4], %s1112
          %s1114 = sand.u32 %s156, 1
          %s1115 = smul.addr %s1114, 8
          %s1116 = scalar_lea.vmem [#allocation10], %s1115
          %1118 = dma.done %s1113, 128
        $region64: #{tpu_custom_call.1} parent=59 // pred_fallthru
          _
      $region60: #{tpu_custom_call.1} parent=5 // pred_fallthru
        _
    $region6: #{tpu_custom_call.1} parent=1 // loop_footer
      %s26 = sadd.s32 1, %s22
    $region7: #{tpu_custom_call.1} parent=1 // loop_footer_branch
      %21 = sbr.rel target = $region3
    $region8: #{tpu_custom_call.1} parent=1 // loop_exit
      _
    %1119 = vsyncpa [#allocation3], 1
    %s1120 = scalar_lea.sflag [#allocation3], 1
    %1121 = vsyncpa %s1120, 1
    %1122 = vsyncpa [#allocation6], 1
    %s1123 = scalar_lea.sflag [#allocation6], 1
    %1124 = vsyncpa %s1123, 1
    %1125 = vsyncpa [#allocation9], 1
    %s1126 = scalar_lea.sflag [#allocation9], 1
    %1127 = vsyncpa %s1126, 1
    %1128 = vsyncpa [#allocation4], 1
    %s1129 = scalar_lea.sflag [#allocation4], 1
    %1130 = vsyncpa %s1129, 1

</llo_original>
